<compile_context>
chip_gen: v6e
topology: v6e:2x2x1
jax: 0.10.0
libtpu: 0.0.40
codegen_flags: <defaults>
</compile_context>

<pallas_src>
import math
import functools

import jax
import jax.numpy as jnp
from jax import lax
from jax.experimental import pallas as pl
from jax.experimental.pallas import tpu as pltpu


# ----------------------------- configuration --------------------------------
class Config:
    n_embd = 128
    n_head = 4
    n_query_groups = 2
    head_size = 32
    bias = True
    attention_normalize = True
    kernel = "elu"
    attn_pdrop = 0.0          # dropout p=0 -> identity


# ------------------------------ fused Pallas kernel --------------------------
def _fused_attn_kernel(x_ref, w_attn_ref, b_attn_ref, w_proj_ref, b_proj_ref,
                       cos_ref, sin_ref, o_ref, y_scr,
                       *, n_head, n_query_groups, head_size, scale):
    T = x_ref.shape[1]
    hs = head_size
    half = hs // 2
    q_per_kv = n_head // n_query_groups
    total_qkv = q_per_kv + 2
    gw = q_per_kv * hs            # output lane width of one KV group

    # ---- qkv projection: (T, C) @ (C, ng*total_qkv*hs) on the MXU, bf16 -> f32 ----
    x_bf = x_ref[0].astype(jnp.bfloat16)                                   # (T, C)
    qkv = jnp.dot(x_bf, w_attn_ref[...],
                  preferred_element_type=jnp.float32) + b_attn_ref[...]    # (T, 256) f32

    cos = cos_ref[...]                                                     # (T, hs//2)
    sin = sin_ref[...]

    def rope(xh):                                                          # (T, hs) f32
        x1 = xh[:, :half]
        x2 = xh[:, half:]
        return jnp.concatenate([x1 * cos - x2 * sin,
                                x1 * sin + x2 * cos], axis=-1)

    def elu1(z):  # elu(z) + 1, exp clamped in the discarded branch
        return jnp.where(z > 0, z, jnp.exp(jnp.minimum(z, 0.0)) - 1.0) + 1.0

    # ---- causal multiplicative mask, generated in-kernel (no HBM read) ----
    row = lax.broadcasted_iota(jnp.int32, (T, T), 0)
    col = lax.broadcasted_iota(jnp.int32, (T, T), 1)
    mask_tt = (row >= col).astype(jnp.float32)                             # (T, T)
    mask = jnp.concatenate([mask_tt] * q_per_kv, axis=0)                   # (q_per_kv*T, T)

    # ---- attention, batched per KV group (GQA by lane indexing, no repeat) ----
    for g in range(n_query_groups):                                        # static unroll
        base = g * total_qkv * hs

        k_g = elu1(rope(qkv[:, base + q_per_kv * hs:base + (q_per_kv + 1) * hs]))
        k_bf = k_g.astype(jnp.bfloat16)                                    # (T, hs)
        v_bf = qkv[:, base + (q_per_kv + 1) * hs:
                   base + total_qkv * hs].astype(jnp.bfloat16)             # (T, hs)

        # stack the q_per_kv heads sharing this KV head -> one fat matmul;
        # scale folded into q (identical scores to (q@k^T)*scale, same 1e-8 semantics).
        q_heads = []
        for j in range(q_per_kv):
            qh = elu1(rope(qkv[:, base + j * hs:base + (j + 1) * hs])) * scale
            q_heads.append(qh)
        q_stack = jnp.concatenate(q_heads, axis=0).astype(jnp.bfloat16)    # (q_per_kv*T, hs)

        s = lax.dot_general(q_stack, k_bf, (((1,), (1,)), ((), ())),
                            preferred_element_type=jnp.float32)            # (q_per_kv*T, T)
        s = s * mask                                                       # multiplicative causal bias
        # attention_normalize (kernel == 'elu'): s / (sum(s, -1) + 1e-8)
        inv = pl.reciprocal(jnp.sum(s, axis=-1, keepdims=True) + 1e-8, approx=True)
        s = s * inv
        # dropout p=0 is identity.
        pv = jnp.dot(s.astype(jnp.bfloat16), v_bf,
                     preferred_element_type=jnp.float32)                   # (q_per_kv*T, hs)

        # un-stack the heads and write straight into this group's lane slice of the
        # lane-dense y slab (head order matches transpose(0,2,1,3).reshape(B,T,C)).
        y_g = jnp.concatenate([pv[j * T:(j + 1) * T] for j in range(q_per_kv)],
                              axis=-1)                                     # (T, q_per_kv*hs)
        y_scr[:, g * gw:(g + 1) * gw] = y_g

    # ---- output projection: (T, C) @ (C, C) on the MXU ----
    y_bf = y_scr[...].astype(jnp.bfloat16)
    o_ref[0] = jnp.dot(y_bf, w_proj_ref[...],
                       preferred_element_type=jnp.float32) + b_proj_ref[...]


def causal_self_attention_forward(params, x, rope, cfg):
    """Whole layer (qkv proj + RoPE + ELU + GQA attention + out proj) in one pallas_call."""
    B, T, C = x.shape
    nh, ng, hs = cfg.n_head, cfg.n_query_groups, cfg.head_size
    qkv_out = (nh + 2 * ng) * hs
    cos, sin = rope
    scale = 1.0 / math.sqrt(hs)

    kern = functools.partial(_fused_attn_kernel, n_head=nh, n_query_groups=ng,
                             head_size=hs, scale=scale)

    return pl.pallas_call(
        kern,
        out_shape=jax.ShapeDtypeStruct((B, T, C), jnp.float32),
        grid_spec=pltpu.PrefetchScalarGridSpec(
            num_scalar_prefetch=0,
            grid=(B,),
            in_specs=[
                pl.BlockSpec((1, T, C), lambda b: (b, 0, 0)),       # x: per-batch block
                pl.BlockSpec((C, qkv_out), lambda b: (0, 0)),       # attn W^T: VMEM-resident
                pl.BlockSpec((1, qkv_out), lambda b: (0, 0)),       # attn bias
                pl.BlockSpec((C, C), lambda b: (0, 0)),             # proj W^T: VMEM-resident
                pl.BlockSpec((1, C), lambda b: (0, 0)),             # proj bias
                pl.BlockSpec((T, hs // 2), lambda b: (0, 0)),       # rope cos
                pl.BlockSpec((T, hs // 2), lambda b: (0, 0)),       # rope sin
            ],
            out_specs=pl.BlockSpec((1, T, C), lambda b: (b, 0, 0)),
            scratch_shapes=[pltpu.VMEM((T, C), jnp.float32)],       # lane-dense y slab
        ),
        compiler_params=pltpu.CompilerParams(dimension_semantics=("parallel",)),
    )(
        x,
        params["attn_w_t"].astype(jnp.bfloat16),
        params["attn_b"].reshape(1, qkv_out),
        params["proj_w_t"].astype(jnp.bfloat16),
        params["proj_b"].reshape(1, C),
        cos, sin,
    )


# ------------------------------- RoPE helpers ---------------------------------
def apply_rope(x, cos, sin):
    # x: (B, T, H, hs); cos/sin: (T, hs//2). Non-interleaved (rotate halves).
    hs = x.shape[-1]
    x1 = x[..., : hs // 2]
    x2 = x[..., hs // 2:]
    c = cos[None, :, None, :]
    s = sin[None, :, None, :]
    return jnp.concatenate([x1 * c - x2 * s, x1 * s + x2 * c], axis=-1)


def build_rope_cache(T, hs, base=10000.0):
    inv_freq = 1.0 / (base ** (jnp.arange(0, hs, 2, dtype=jnp.float32) / hs))
    t = jnp.arange(T, dtype=jnp.float32)
    freqs = jnp.outer(t, inv_freq)  # (T, hs//2)
    return jnp.cos(freqs), jnp.sin(freqs)


# ------------------------------ reference (jnp) -------------------------------
def reference_forward(params, x, rope, attention_bias, cfg):
    B, T, C = x.shape
    nh, ng, hs = cfg.n_head, cfg.n_query_groups, cfg.head_size
    q_per_kv = nh // ng
    total_qkv = q_per_kv + 2

    qkv = x.reshape(B * T, C) @ params["attn_w_t"] + params["attn_b"]
    qkv = qkv.reshape(B, T, ng, total_qkv, hs)
    q = qkv[:, :, :, :q_per_kv, :].reshape(B, T, nh, hs)
    k = qkv[:, :, :, q_per_kv:q_per_kv + 1, :].reshape(B, T, ng, hs)
    v = qkv[:, :, :, q_per_kv + 1:, :].reshape(B, T, ng, hs)

    cos, sin = rope
    q = apply_rope(q, cos, sin)
    k = apply_rope(k, cos, sin)
    q = jax.nn.elu(q) + 1.0
    k = jax.nn.elu(k) + 1.0

    q = jnp.transpose(q, (0, 2, 1, 3))
    k = jnp.transpose(k, (0, 2, 1, 3))
    v = jnp.transpose(v, (0, 2, 1, 3))
    k = jnp.repeat(k, q_per_kv, axis=1)
    v = jnp.repeat(v, q_per_kv, axis=1)

    scale = 1.0 / math.sqrt(hs)
    s = jnp.einsum("bhqd,bhkd->bhqk", q, k) * scale
    s = s * attention_bias[:, :, :T, :T]
    s = s / (jnp.sum(s, axis=-1, keepdims=True) + 1e-8)
    y = jnp.einsum("bhqk,bhkd->bhqd", s, v)
    y = y.transpose(0, 2, 1, 3).reshape(B, T, C)
    y = y.reshape(B * T, C) @ params["proj_w_t"] + params["proj_b"]
    return y.reshape(B, T, C)


# ---------------------------------- main --------------------------------------
if __name__ == "__main__":
    cfg = Config()
    B, T, C = 2, 8, cfg.n_embd
    qkv_out = (cfg.n_head + 2 * cfg.n_query_groups) * cfg.head_size

    key = jax.random.PRNGKey(0)
    k1, k2, k3, k4, k5 = jax.random.split(key, 5)

    # deterministic parameter init (torch nn.Linear weight is (out, in); store transposed)
    params = {
        "attn_w_t": (0.02 * jax.random.normal(k1, (C, qkv_out))).astype(jnp.float32),
        "attn_b": (0.01 * jax.random.normal(k2, (qkv_out,))).astype(jnp.float32),
        "proj_w_t": (0.02 * jax.random.normal(k3, (C, C))).astype(jnp.float32),
        "proj_b": (0.01 * jax.random.normal(k4, (C,))).astype(jnp.float32),
    }

    x = jax.random.normal(k5, (B, T, C), dtype=jnp.float32)
    rope = build_rope_cache(T, cfg.head_size)

    # causal multiplicative attention bias (1, 1, max_seq, max_seq) -- used by the
    # reference; the fused kernel generates the identical causal mask in-kernel.
    max_seq = T
    attention_bias = jnp.tril(jnp.ones((max_seq, max_seq), jnp.float32))[None, None]

    y = causal_self_attention_forward(params, x, rope, cfg)
    y = jax.block_until_ready(y)

    y_ref = reference_forward(params, x, rope, attention_bias, cfg)
    assert y.shape == (B, T, C)
    assert jnp.allclose(y, y_ref, rtol=2e-2, atol=2e-2), "mismatch vs reference"

    print("KERNEL_OK")
</pallas_src>

<mosaic_0001>
module attributes {stable_mosaic.version = 11 : i64} {
  func.func @_fused_attn_kernel(%arg0: i32, %arg1: memref<1x8x128xf32, #tpu.memory_space<vmem>>, %arg2: memref<128x256xbf16, #tpu.memory_space<vmem>>, %arg3: memref<1x256xf32, #tpu.memory_space<vmem>>, %arg4: memref<128x128xbf16, #tpu.memory_space<vmem>>, %arg5: memref<1x128xf32, #tpu.memory_space<vmem>>, %arg6: memref<8x16xf32, #tpu.memory_space<vmem>>, %arg7: memref<8x16xf32, #tpu.memory_space<vmem>>, %arg8: memref<1x8x128xf32, #tpu.memory_space<vmem>>, %arg9: memref<8x128xf32, #tpu.memory_space<vmem>>) attributes {dimension_semantics = [#tpu.dimension_semantics<parallel>], iteration_bounds = array<i64: 2>, scalar_prefetch = 0 : i64, scratch_operands = 1 : i64, tpu.core_type = #tpu.core_type<tc>, window_params = [{transform_indices = @transform_0, window_bounds = array<i64: 1, 8, 128>}, {pipeline_mode = #tpu.pipeline_mode<synchronous>, transform_indices = @transform_1, window_bounds = array<i64: 128, 256>}, {pipeline_mode = #tpu.pipeline_mode<synchronous>, transform_indices = @transform_2, window_bounds = array<i64: 1, 256>}, {pipeline_mode = #tpu.pipeline_mode<synchronous>, transform_indices = @transform_3, window_bounds = array<i64: 128, 128>}, {pipeline_mode = #tpu.pipeline_mode<synchronous>, transform_indices = @transform_4, window_bounds = array<i64: 1, 128>}, {pipeline_mode = #tpu.pipeline_mode<synchronous>, transform_indices = @transform_5, window_bounds = array<i64: 8, 16>}, {pipeline_mode = #tpu.pipeline_mode<synchronous>, transform_indices = @transform_6, window_bounds = array<i64: 8, 16>}, {transform_indices = @transform_7, window_bounds = array<i64: 1, 8, 128>}]} {
    %c0 = arith.constant 0 : index
    %c0_0 = arith.constant 0 : index
    %c0_1 = arith.constant 0 : index
    %0 = vector.load %arg1[%c0, %c0_0, %c0_1] : memref<1x8x128xf32, #tpu.memory_space<vmem>>, vector<1x8x128xf32>
    %1 = vector.shape_cast %0 : vector<1x8x128xf32> to vector<8x128xf32>
    %2 = arith.truncf %1 : vector<8x128xf32> to vector<8x128xbf16>
    %c0_2 = arith.constant 0 : index
    %c0_3 = arith.constant 0 : index
    %3 = vector.load %arg2[%c0_2, %c0_3] : memref<128x256xbf16, #tpu.memory_space<vmem>>, vector<128x256xbf16>
    %cst = arith.constant dense<0.000000e+00> : vector<8x256xf32>
    %4 = tpu.matmul %2, %3, %cst {dimension_numbers = #tpu.dot_dimension_numbers<[1], [0], [0], [1], [0, 0, 1, 1], [], []>} : vector<8x128xbf16>, vector<128x256xbf16>, vector<8x256xf32> -> vector<8x256xf32>
    %c0_4 = arith.constant 0 : index
    %c0_5 = arith.constant 0 : index
    %5 = vector.load %arg3[%c0_4, %c0_5] : memref<1x256xf32, #tpu.memory_space<vmem>>, vector<1x256xf32>
    %6 = vector.broadcast %5 : vector<1x256xf32> to vector<8x256xf32>
    %7 = arith.addf %4, %6 : vector<8x256xf32>
    %c0_6 = arith.constant 0 : index
    %c0_7 = arith.constant 0 : index
    %8 = vector.load %arg6[%c0_6, %c0_7] : memref<8x16xf32, #tpu.memory_space<vmem>>, vector<8x16xf32>
    %c0_8 = arith.constant 0 : index
    %c0_9 = arith.constant 0 : index
    %9 = vector.load %arg7[%c0_8, %c0_9] : memref<8x16xf32, #tpu.memory_space<vmem>>, vector<8x16xf32>
    %10 = tpu.iota {dimensions = array<i32: 0>} : vector<8x8xi32>
    %11 = tpu.iota {dimensions = array<i32: 1>} : vector<8x8xi32>
    %12 = arith.cmpi sge, %10, %11 : vector<8x8xi32>
    %13 = arith.extui %12 : vector<8x8xi1> to vector<8x8xi32>
    %14 = arith.sitofp %13 : vector<8x8xi32> to vector<8x8xf32>
    %15 = tpu.concatenate %14, %14 in 0 : vector<8x8xf32>, vector<8x8xf32> -> vector<16x8xf32>
    %16 = vector.extract_strided_slice %7 {offsets = [0, 64], sizes = [8, 32], strides = [1, 1]} : vector<8x256xf32> to vector<8x32xf32>
    %17 = vector.extract_strided_slice %16 {offsets = [0, 0], sizes = [8, 16], strides = [1, 1]} : vector<8x32xf32> to vector<8x16xf32>
    %18 = vector.extract_strided_slice %16 {offsets = [0, 16], sizes = [8, 16], strides = [1, 1]} : vector<8x32xf32> to vector<8x16xf32>
    %19 = arith.mulf %17, %8 : vector<8x16xf32>
    %20 = arith.mulf %18, %9 : vector<8x16xf32>
    %21 = arith.subf %19, %20 : vector<8x16xf32>
    %22 = arith.mulf %17, %9 : vector<8x16xf32>
    %23 = arith.mulf %18, %8 : vector<8x16xf32>
    %24 = arith.addf %22, %23 : vector<8x16xf32>
    %25 = tpu.concatenate %21, %24 in 1 : vector<8x16xf32>, vector<8x16xf32> -> vector<8x32xf32>
    %cst_10 = arith.constant 0.000000e+00 : f32
    %26 = vector.broadcast %cst_10 : f32 to vector<8x32xf32>
    %27 = arith.cmpf ogt, %25, %26 : vector<8x32xf32>
    %cst_11 = arith.constant 0.000000e+00 : f32
    %28 = vector.broadcast %cst_11 : f32 to vector<8x32xf32>
    %29 = arith.minimumf %25, %28 : vector<8x32xf32>
    %30 = math.exp %29 : vector<8x32xf32>
    %cst_12 = arith.constant 1.000000e+00 : f32
    %31 = vector.broadcast %cst_12 : f32 to vector<8x32xf32>
    %32 = arith.subf %30, %31 : vector<8x32xf32>
    %33 = arith.select %27, %25, %32 : vector<8x32xi1>, vector<8x32xf32>
    %cst_13 = arith.constant 1.000000e+00 : f32
    %34 = vector.broadcast %cst_13 : f32 to vector<8x32xf32>
    %35 = arith.addf %33, %34 : vector<8x32xf32>
    %36 = arith.truncf %35 : vector<8x32xf32> to vector<8x32xbf16>
    %37 = vector.extract_strided_slice %7 {offsets = [0, 96], sizes = [8, 32], strides = [1, 1]} : vector<8x256xf32> to vector<8x32xf32>
    %38 = arith.truncf %37 : vector<8x32xf32> to vector<8x32xbf16>
    %39 = vector.extract_strided_slice %7 {offsets = [0, 0], sizes = [8, 32], strides = [1, 1]} : vector<8x256xf32> to vector<8x32xf32>
    %40 = vector.extract_strided_slice %39 {offsets = [0, 0], sizes = [8, 16], strides = [1, 1]} : vector<8x32xf32> to vector<8x16xf32>
    %41 = vector.extract_strided_slice %39 {offsets = [0, 16], sizes = [8, 16], strides = [1, 1]} : vector<8x32xf32> to vector<8x16xf32>
    %42 = arith.mulf %40, %8 : vector<8x16xf32>
    %43 = arith.mulf %41, %9 : vector<8x16xf32>
    %44 = arith.subf %42, %43 : vector<8x16xf32>
    %45 = arith.mulf %40, %9 : vector<8x16xf32>
    %46 = arith.mulf %41, %8 : vector<8x16xf32>
    %47 = arith.addf %45, %46 : vector<8x16xf32>
    %48 = tpu.concatenate %44, %47 in 1 : vector<8x16xf32>, vector<8x16xf32> -> vector<8x32xf32>
    %cst_14 = arith.constant 0.000000e+00 : f32
    %49 = vector.broadcast %cst_14 : f32 to vector<8x32xf32>
    %50 = arith.cmpf ogt, %48, %49 : vector<8x32xf32>
    %cst_15 = arith.constant 0.000000e+00 : f32
    %51 = vector.broadcast %cst_15 : f32 to vector<8x32xf32>
    %52 = arith.minimumf %48, %51 : vector<8x32xf32>
    %53 = math.exp %52 : vector<8x32xf32>
    %cst_16 = arith.constant 1.000000e+00 : f32
    %54 = vector.broadcast %cst_16 : f32 to vector<8x32xf32>
    %55 = arith.subf %53, %54 : vector<8x32xf32>
    %56 = arith.select %50, %48, %55 : vector<8x32xi1>, vector<8x32xf32>
    %cst_17 = arith.constant 1.000000e+00 : f32
    %57 = vector.broadcast %cst_17 : f32 to vector<8x32xf32>
    %58 = arith.addf %56, %57 : vector<8x32xf32>
    %cst_18 = arith.constant 0.176776692 : f32
    %59 = vector.broadcast %cst_18 : f32 to vector<8x32xf32>
    %60 = arith.mulf %58, %59 : vector<8x32xf32>
    %61 = vector.extract_strided_slice %7 {offsets = [0, 32], sizes = [8, 32], strides = [1, 1]} : vector<8x256xf32> to vector<8x32xf32>
    %62 = vector.extract_strided_slice %61 {offsets = [0, 0], sizes = [8, 16], strides = [1, 1]} : vector<8x32xf32> to vector<8x16xf32>
    %63 = vector.extract_strided_slice %61 {offsets = [0, 16], sizes = [8, 16], strides = [1, 1]} : vector<8x32xf32> to vector<8x16xf32>
    %64 = arith.mulf %62, %8 : vector<8x16xf32>
    %65 = arith.mulf %63, %9 : vector<8x16xf32>
    %66 = arith.subf %64, %65 : vector<8x16xf32>
    %67 = arith.mulf %62, %9 : vector<8x16xf32>
    %68 = arith.mulf %63, %8 : vector<8x16xf32>
    %69 = arith.addf %67, %68 : vector<8x16xf32>
    %70 = tpu.concatenate %66, %69 in 1 : vector<8x16xf32>, vector<8x16xf32> -> vector<8x32xf32>
    %cst_19 = arith.constant 0.000000e+00 : f32
    %71 = vector.broadcast %cst_19 : f32 to vector<8x32xf32>
    %72 = arith.cmpf ogt, %70, %71 : vector<8x32xf32>
    %cst_20 = arith.constant 0.000000e+00 : f32
    %73 = vector.broadcast %cst_20 : f32 to vector<8x32xf32>
    %74 = arith.minimumf %70, %73 : vector<8x32xf32>
    %75 = math.exp %74 : vector<8x32xf32>
    %cst_21 = arith.constant 1.000000e+00 : f32
    %76 = vector.broadcast %cst_21 : f32 to vector<8x32xf32>
    %77 = arith.subf %75, %76 : vector<8x32xf32>
    %78 = arith.select %72, %70, %77 : vector<8x32xi1>, vector<8x32xf32>
    %cst_22 = arith.constant 1.000000e+00 : f32
    %79 = vector.broadcast %cst_22 : f32 to vector<8x32xf32>
    %80 = arith.addf %78, %79 : vector<8x32xf32>
    %cst_23 = arith.constant 0.176776692 : f32
    %81 = vector.broadcast %cst_23 : f32 to vector<8x32xf32>
    %82 = arith.mulf %80, %81 : vector<8x32xf32>
    %83 = tpu.concatenate %60, %82 in 0 : vector<8x32xf32>, vector<8x32xf32> -> vector<16x32xf32>
    %84 = arith.truncf %83 : vector<16x32xf32> to vector<16x32xbf16>
    %cst_24 = arith.constant dense<0.000000e+00> : vector<16x8xf32>
    %85 = tpu.matmul %84, %36, %cst_24 {dimension_numbers = #tpu.dot_dimension_numbers<[1], [1], [0], [0], [0, 0, 1, 0], [], []>} : vector<16x32xbf16>, vector<8x32xbf16>, vector<16x8xf32> -> vector<16x8xf32>
    %86 = arith.mulf %85, %15 : vector<16x8xf32>
    %cst_25 = arith.constant dense<0.000000e+00> : vector<16xf32>
    %87 = vector.multi_reduction <add>, %86, %cst_25 [1] : vector<16x8xf32> to vector<16xf32>
    %88 = vector.shape_cast %87 : vector<16xf32> to vector<16x1xf32>
    %cst_26 = arith.constant 9.99999993E-9 : f32
    %89 = vector.broadcast %cst_26 : f32 to vector<16x1xf32>
    %90 = arith.addf %88, %89 : vector<16x1xf32>
    %91 = tpu.reciprocal %90 {approx = true} : vector<16x1xf32> -> vector<16x1xf32>
    %92 = vector.broadcast %91 : vector<16x1xf32> to vector<16x8xf32>
    %93 = arith.mulf %86, %92 : vector<16x8xf32>
    %94 = arith.truncf %93 : vector<16x8xf32> to vector<16x8xbf16>
    %cst_27 = arith.constant dense<0.000000e+00> : vector<16x32xf32>
    %95 = tpu.matmul %94, %38, %cst_27 {dimension_numbers = #tpu.dot_dimension_numbers<[1], [0], [0], [1], [0, 0, 1, 1], [], []>} : vector<16x8xbf16>, vector<8x32xbf16>, vector<16x32xf32> -> vector<16x32xf32>
    %96 = vector.extract_strided_slice %95 {offsets = [0, 0], sizes = [8, 32], strides = [1, 1]} : vector<16x32xf32> to vector<8x32xf32>
    %97 = vector.extract_strided_slice %95 {offsets = [8, 0], sizes = [8, 32], strides = [1, 1]} : vector<16x32xf32> to vector<8x32xf32>
    %98 = tpu.concatenate %96, %97 in 1 : vector<8x32xf32>, vector<8x32xf32> -> vector<8x64xf32>
    %c0_28 = arith.constant 0 : index
    %c0_29 = arith.constant 0 : index
    %99 = vector.load %arg9[%c0_28, %c0_29] : memref<8x128xf32, #tpu.memory_space<vmem>>, vector<8x64xf32>
    tpu.vector_store %arg9[%c0_28, %c0_29], %98 {strides = array<i32>} : memref<8x128xf32, #tpu.memory_space<vmem>>, vector<8x64xf32>,
    %100 = vector.extract_strided_slice %7 {offsets = [0, 192], sizes = [8, 32], strides = [1, 1]} : vector<8x256xf32> to vector<8x32xf32>
    %101 = vector.extract_strided_slice %100 {offsets = [0, 0], sizes = [8, 16], strides = [1, 1]} : vector<8x32xf32> to vector<8x16xf32>
    %102 = vector.extract_strided_slice %100 {offsets = [0, 16], sizes = [8, 16], strides = [1, 1]} : vector<8x32xf32> to vector<8x16xf32>
    %103 = arith.mulf %101, %8 : vector<8x16xf32>
    %104 = arith.mulf %102, %9 : vector<8x16xf32>
    %105 = arith.subf %103, %104 : vector<8x16xf32>
    %106 = arith.mulf %101, %9 : vector<8x16xf32>
    %107 = arith.mulf %102, %8 : vector<8x16xf32>
    %108 = arith.addf %106, %107 : vector<8x16xf32>
    %109 = tpu.concatenate %105, %108 in 1 : vector<8x16xf32>, vector<8x16xf32> -> vector<8x32xf32>
    %cst_30 = arith.constant 0.000000e+00 : f32
    %110 = vector.broadcast %cst_30 : f32 to vector<8x32xf32>
    %111 = arith.cmpf ogt, %109, %110 : vector<8x32xf32>
    %cst_31 = arith.constant 0.000000e+00 : f32
    %112 = vector.broadcast %cst_31 : f32 to vector<8x32xf32>
    %113 = arith.minimumf %109, %112 : vector<8x32xf32>
    %114 = math.exp %113 : vector<8x32xf32>
    %cst_32 = arith.constant 1.000000e+00 : f32
    %115 = vector.broadcast %cst_32 : f32 to vector<8x32xf32>
    %116 = arith.subf %114, %115 : vector<8x32xf32>
    %117 = arith.select %111, %109, %116 : vector<8x32xi1>, vector<8x32xf32>
    %cst_33 = arith.constant 1.000000e+00 : f32
    %118 = vector.broadcast %cst_33 : f32 to vector<8x32xf32>
    %119 = arith.addf %117, %118 : vector<8x32xf32>
    %120 = arith.truncf %119 : vector<8x32xf32> to vector<8x32xbf16>
    %121 = vector.extract_strided_slice %7 {offsets = [0, 224], sizes = [8, 32], strides = [1, 1]} : vector<8x256xf32> to vector<8x32xf32>
    %122 = arith.truncf %121 : vector<8x32xf32> to vector<8x32xbf16>
    %123 = vector.extract_strided_slice %7 {offsets = [0, 128], sizes = [8, 32], strides = [1, 1]} : vector<8x256xf32> to vector<8x32xf32>
    %124 = vector.extract_strided_slice %123 {offsets = [0, 0], sizes = [8, 16], strides = [1, 1]} : vector<8x32xf32> to vector<8x16xf32>
    %125 = vector.extract_strided_slice %123 {offsets = [0, 16], sizes = [8, 16], strides = [1, 1]} : vector<8x32xf32> to vector<8x16xf32>
    %126 = arith.mulf %124, %8 : vector<8x16xf32>
    %127 = arith.mulf %125, %9 : vector<8x16xf32>
    %128 = arith.subf %126, %127 : vector<8x16xf32>
    %129 = arith.mulf %124, %9 : vector<8x16xf32>
    %130 = arith.mulf %125, %8 : vector<8x16xf32>
    %131 = arith.addf %129, %130 : vector<8x16xf32>
    %132 = tpu.concatenate %128, %131 in 1 : vector<8x16xf32>, vector<8x16xf32> -> vector<8x32xf32>
    %cst_34 = arith.constant 0.000000e+00 : f32
    %133 = vector.broadcast %cst_34 : f32 to vector<8x32xf32>
    %134 = arith.cmpf ogt, %132, %133 : vector<8x32xf32>
    %cst_35 = arith.constant 0.000000e+00 : f32
    %135 = vector.broadcast %cst_35 : f32 to vector<8x32xf32>
    %136 = arith.minimumf %132, %135 : vector<8x32xf32>
    %137 = math.exp %136 : vector<8x32xf32>
    %cst_36 = arith.constant 1.000000e+00 : f32
    %138 = vector.broadcast %cst_36 : f32 to vector<8x32xf32>
    %139 = arith.subf %137, %138 : vector<8x32xf32>
    %140 = arith.select %134, %132, %139 : vector<8x32xi1>, vector<8x32xf32>
    %cst_37 = arith.constant 1.000000e+00 : f32
    %141 = vector.broadcast %cst_37 : f32 to vector<8x32xf32>
    %142 = arith.addf %140, %141 : vector<8x32xf32>
    %cst_38 = arith.constant 0.176776692 : f32
    %143 = vector.broadcast %cst_38 : f32 to vector<8x32xf32>
    %144 = arith.mulf %142, %143 : vector<8x32xf32>
    %145 = vector.extract_strided_slice %7 {offsets = [0, 160], sizes = [8, 32], strides = [1, 1]} : vector<8x256xf32> to vector<8x32xf32>
    %146 = vector.extract_strided_slice %145 {offsets = [0, 0], sizes = [8, 16], strides = [1, 1]} : vector<8x32xf32> to vector<8x16xf32>
    %147 = vector.extract_strided_slice %145 {offsets = [0, 16], sizes = [8, 16], strides = [1, 1]} : vector<8x32xf32> to vector<8x16xf32>
    %148 = arith.mulf %146, %8 : vector<8x16xf32>
    %149 = arith.mulf %147, %9 : vector<8x16xf32>
    %150 = arith.subf %148, %149 : vector<8x16xf32>
    %151 = arith.mulf %146, %9 : vector<8x16xf32>
    %152 = arith.mulf %147, %8 : vector<8x16xf32>
    %153 = arith.addf %151, %152 : vector<8x16xf32>
    %154 = tpu.concatenate %150, %153 in 1 : vector<8x16xf32>, vector<8x16xf32> -> vector<8x32xf32>
    %cst_39 = arith.constant 0.000000e+00 : f32
    %155 = vector.broadcast %cst_39 : f32 to vector<8x32xf32>
    %156 = arith.cmpf ogt, %154, %155 : vector<8x32xf32>
    %cst_40 = arith.constant 0.000000e+00 : f32
    %157 = vector.broadcast %cst_40 : f32 to vector<8x32xf32>
    %158 = arith.minimumf %154, %157 : vector<8x32xf32>
    %159 = math.exp %158 : vector<8x32xf32>
    %cst_41 = arith.constant 1.000000e+00 : f32
    %160 = vector.broadcast %cst_41 : f32 to vector<8x32xf32>
    %161 = arith.subf %159, %160 : vector<8x32xf32>
    %162 = arith.select %156, %154, %161 : vector<8x32xi1>, vector<8x32xf32>
    %cst_42 = arith.constant 1.000000e+00 : f32
    %163 = vector.broadcast %cst_42 : f32 to vector<8x32xf32>
    %164 = arith.addf %162, %163 : vector<8x32xf32>
    %cst_43 = arith.constant 0.176776692 : f32
    %165 = vector.broadcast %cst_43 : f32 to vector<8x32xf32>
    %166 = arith.mulf %164, %165 : vector<8x32xf32>
    %167 = tpu.concatenate %144, %166 in 0 : vector<8x32xf32>, vector<8x32xf32> -> vector<16x32xf32>
    %168 = arith.truncf %167 : vector<16x32xf32> to vector<16x32xbf16>
    %cst_44 = arith.constant dense<0.000000e+00> : vector<16x8xf32>
    %169 = tpu.matmul %168, %120, %cst_44 {dimension_numbers = #tpu.dot_dimension_numbers<[1], [1], [0], [0], [0, 0, 1, 0], [], []>} : vector<16x32xbf16>, vector<8x32xbf16>, vector<16x8xf32> -> vector<16x8xf32>
    %170 = arith.mulf %169, %15 : vector<16x8xf32>
    %cst_45 = arith.constant dense<0.000000e+00> : vector<16xf32>
    %171 = vector.multi_reduction <add>, %170, %cst_45 [1] : vector<16x8xf32> to vector<16xf32>
    %172 = vector.shape_cast %171 : vector<16xf32> to vector<16x1xf32>
    %cst_46 = arith.constant 9.99999993E-9 : f32
    %173 = vector.broadcast %cst_46 : f32 to vector<16x1xf32>
    %174 = arith.addf %172, %173 : vector<16x1xf32>
    %175 = tpu.reciprocal %174 {approx = true} : vector<16x1xf32> -> vector<16x1xf32>
    %176 = vector.broadcast %175 : vector<16x1xf32> to vector<16x8xf32>
    %177 = arith.mulf %170, %176 : vector<16x8xf32>
    %178 = arith.truncf %177 : vector<16x8xf32> to vector<16x8xbf16>
    %cst_47 = arith.constant dense<0.000000e+00> : vector<16x32xf32>
    %179 = tpu.matmul %178, %122, %cst_47 {dimension_numbers = #tpu.dot_dimension_numbers<[1], [0], [0], [1], [0, 0, 1, 1], [], []>} : vector<16x8xbf16>, vector<8x32xbf16>, vector<16x32xf32> -> vector<16x32xf32>
    %180 = vector.extract_strided_slice %179 {offsets = [0, 0], sizes = [8, 32], strides = [1, 1]} : vector<16x32xf32> to vector<8x32xf32>
    %181 = vector.extract_strided_slice %179 {offsets = [8, 0], sizes = [8, 32], strides = [1, 1]} : vector<16x32xf32> to vector<8x32xf32>
    %182 = tpu.concatenate %180, %181 in 1 : vector<8x32xf32>, vector<8x32xf32> -> vector<8x64xf32>
    %c0_48 = arith.constant 0 : index
    %c64 = arith.constant 64 : index
    %183 = vector.load %arg9[%c0_48, %c64] : memref<8x128xf32, #tpu.memory_space<vmem>>, vector<8x64xf32>
    tpu.vector_store %arg9[%c0_48, %c64], %182 {strides = array<i32>} : memref<8x128xf32, #tpu.memory_space<vmem>>, vector<8x64xf32>,
    %c0_49 = arith.constant 0 : index
    %c0_50 = arith.constant 0 : index
    %184 = vector.load %arg9[%c0_49, %c0_50] : memref<8x128xf32, #tpu.memory_space<vmem>>, vector<8x128xf32>
    %185 = arith.truncf %184 : vector<8x128xf32> to vector<8x128xbf16>
    %c0_51 = arith.constant 0 : index
    %c0_52 = arith.constant 0 : index
    %186 = vector.load %arg4[%c0_51, %c0_52] : memref<128x128xbf16, #tpu.memory_space<vmem>>, vector<128x128xbf16>
    %cst_53 = arith.constant dense<0.000000e+00> : vector<8x128xf32>
    %187 = tpu.matmul %185, %186, %cst_53 {dimension_numbers = #tpu.dot_dimension_numbers<[1], [0], [0], [1], [0, 0, 1, 1], [], []>} : vector<8x128xbf16>, vector<128x128xbf16>, vector<8x128xf32> -> vector<8x128xf32>
    %c0_54 = arith.constant 0 : index
    %c0_55 = arith.constant 0 : index
    %188 = vector.load %arg5[%c0_54, %c0_55] : memref<1x128xf32, #tpu.memory_space<vmem>>, vector<1x128xf32>
    %189 = vector.broadcast %188 : vector<1x128xf32> to vector<8x128xf32>
    %190 = arith.addf %187, %189 : vector<8x128xf32>
    %c0_56 = arith.constant 0 : index
    %c0_57 = arith.constant 0 : index
    %c0_58 = arith.constant 0 : index
    %191 = vector.load %arg8[%c0_56, %c0_57, %c0_58] : memref<1x8x128xf32, #tpu.memory_space<vmem>>, vector<1x8x128xf32>
    %192 = vector.shape_cast %191 : vector<1x8x128xf32> to vector<8x128xf32>
    %193 = vector.shape_cast %190 : vector<8x128xf32> to vector<1x8x128xf32>
    tpu.vector_store %arg8[%c0_56, %c0_57, %c0_58], %193 {strides = array<i32>} : memref<1x8x128xf32, #tpu.memory_space<vmem>>, vector<1x8x128xf32>,
    return
  }
  func.func @transform_0(%arg0: i32) -> (i32, i32, i32) {
    %c0_i32 = arith.constant 0 : i32
    %c0_i32_0 = arith.constant 0 : i32
    %c0_i32_1 = arith.constant 0 : i32
    return %arg0, %c0_i32, %c0_i32_0 : i32, i32, i32
  }
  func.func @transform_1(%arg0: i32) -> (i32, i32) {
    %c0_i32 = arith.constant 0 : i32
    %c0_i32_0 = arith.constant 0 : i32
    %c0_i32_1 = arith.constant 0 : i32
    return %c0_i32, %c0_i32_0 : i32, i32
  }
  func.func @transform_2(%arg0: i32) -> (i32, i32) {
    %c0_i32 = arith.constant 0 : i32
    %c0_i32_0 = arith.constant 0 : i32
    %c0_i32_1 = arith.constant 0 : i32
    return %c0_i32, %c0_i32_0 : i32, i32
  }
  func.func @transform_3(%arg0: i32) -> (i32, i32) {
    %c0_i32 = arith.constant 0 : i32
    %c0_i32_0 = arith.constant 0 : i32
    %c0_i32_1 = arith.constant 0 : i32
    return %c0_i32, %c0_i32_0 : i32, i32
  }
  func.func @transform_4(%arg0: i32) -> (i32, i32) {
    %c0_i32 = arith.constant 0 : i32
    %c0_i32_0 = arith.constant 0 : i32
    %c0_i32_1 = arith.constant 0 : i32
    return %c0_i32, %c0_i32_0 : i32, i32
  }
  func.func @transform_5(%arg0: i32) -> (i32, i32) {
    %c0_i32 = arith.constant 0 : i32
    %c0_i32_0 = arith.constant 0 : i32
    %c0_i32_1 = arith.constant 0 : i32
    return %c0_i32, %c0_i32_0 : i32, i32
  }
  func.func @transform_6(%arg0: i32) -> (i32, i32) {
    %c0_i32 = arith.constant 0 : i32
    %c0_i32_0 = arith.constant 0 : i32
    %c0_i32_1 = arith.constant 0 : i32
    return %c0_i32, %c0_i32_0 : i32, i32
  }
  func.func @transform_7(%arg0: i32) -> (i32, i32, i32) {
    %c0_i32 = arith.constant 0 : i32
    %c0_i32_0 = arith.constant 0 : i32
    %c0_i32_1 = arith.constant 0 : i32
    return %arg0, %c0_i32, %c0_i32_0 : i32, i32, i32
  }
}

</mosaic_0001>

<llo_original>
// kernel: tpu_custom_call.1
$region0: #{tpu_custom_call.1}
  #allocation0 [shape = 'u32[]', space=smem, size = 0x4, offset = 0x4, fixed_abs, tag = 'smem constant byte address 0x4 - core index']
  #allocation1 [shape = 'u32[144,128]{1,0:T(1,128)}', space=vmem, size = 0x12000, scoped, tag = 'internal scratch']
  #allocation2 [shape = 'f32[8,128]{1,0:T(8,128)}', space=vmem, size = 0x1000, scoped, tag = 'scratch operand']
  %s0 = inlined_call_operand.hbm [shape: f32[2,8,128], index: 0, kind: input, shape index: {}]
  %s1 = inlined_call_operand.hbm [shape: bf16[128,256], index: 1, kind: input, shape index: {}]
  %s2 = inlined_call_operand.hbm [shape: f32[1,256], index: 2, kind: input, shape index: {}]
  %s3 = inlined_call_operand.hbm [shape: bf16[128,128], index: 3, kind: input, shape index: {}]
  %s4 = inlined_call_operand.vmem [shape: f32[1,128], index: 4, kind: input, shape index: {}]
  %s5 = inlined_call_operand.vmem [shape: f32[8,16], index: 5, kind: input, shape index: {}]
  %s6 = inlined_call_operand.hbm [shape: f32[8,16], index: 6, kind: input, shape index: {}]
  %s7 = inlined_call_operand.hbm [shape: f32[2,8,128], index: 7, kind: output, shape index: {}]
  %s8 = sld [smem:[#allocation0]]
  $region81: #{tpu_custom_call.1} parent=0
    _
  %s10 = ssub.s32 1, %s8
  %s11 = scalar_select 0, %s10, %s8
  $region1: #{tpu_custom_call.1} parent=0
    #allocation3 [shape = 'u8[8192]{0}', space=vmem, size = 0x2000, scoped, tag = 'input window, operand 0']
    #allocation4 [shape = 's32[2]{0}', space=sflag, size = 0x8, scoped, tag = 'scoped memory for tpu_custom_call.1']
    #allocation5 [shape = 's32[2]{0}', space=sflag, size = 0x8, scoped, tag = 'scoped memory for tpu_custom_call.1']
    #allocation6 [shape = 'u8[65536]{0}', space=vmem, size = 0x10000, scoped, tag = 'input window, operand 1, single buffered']
    #allocation7 [shape = 's32[1]{0}', space=sflag, size = 0x4, scoped, tag = 'scoped memory for tpu_custom_call.1']
    #allocation8 [shape = 'u8[1024]{0}', space=vmem, size = 0x400, scoped, tag = 'input window, operand 2, single buffered']
    #allocation9 [shape = 'u8[32768]{0}', space=vmem, size = 0x8000, scoped, tag = 'input window, operand 3, single buffered']
    #allocation10 [shape = 's32[1]{0}', space=sflag, size = 0x4, scoped, tag = 'scoped memory for tpu_custom_call.1']
    #allocation11 [shape = 'u8[4096]{0}', space=vmem, size = 0x1000, scoped, tag = 'input window, operand 6, single buffered']
    #allocation12 [shape = 'u8[8192]{0}', space=vmem, size = 0x2000, scoped, tag = 'output window, operand 0']
    %12 = vsyncpa [#allocation4], 0
    %s13 = scalar_lea.sflag [#allocation4], 1
    %14 = vsyncpa %s13, 0
    %15 = vsyncpa [#allocation7], 0
    %16 = vsyncpa [#allocation10], 0
    %17 = vsyncpa [#allocation5], 0
    %s18 = scalar_lea.sflag [#allocation5], 1
    %19 = vsyncpa %s18, 0
    loop: start=0, step=1, limit=4
    $region2: #{tpu_custom_call.1} parent=1 // loop_pre_header
      _
    $region3: #{tpu_custom_call.1} parent=1 // loop_header
      %s21 = sphi 0, %s25
      %p22 = scmp.ge.s32.totalorder %s21, 4
      %s31 = sphi 0, %s33
      %s34 = sphi 0, %s31
      %s35 = sphi 0, %s34
      %s51 = sphi 0, %s35
      %s55 = sphi 0, %s55
      %s57 = sphi 0, %s55
      %s58 = sphi 0, %s57
      %s72 = sphi 0, %s58
      %s76 = sphi 0, %s76
      %s78 = sphi 0, %s76
      %s79 = sphi 0, %s78
      %s93 = sphi 0, %s79
      %s97 = sphi 0, %s97
      %s99 = sphi 0, %s97
      %s100 = sphi 0, %s99
      %s114 = sphi 0, %s100
      %s118 = sphi 0, %s118
      %s120 = sphi 0, %s118
      %s121 = sphi 0, %s120
      %s135 = sphi 0, %s121
      %s139 = sphi 0, %s139
      %s141 = sphi 0, %s139
      %s142 = sphi 0, %s141
      %s156 = sphi 0, %s142
      %s160 = sphi 0, %s160
      %s162 = sphi 0, %s160
      %s163 = sphi 0, %s162
      %s177 = sphi 0, %s163
      %s183 = sphi 0, %s185
      %s186 = sphi 0, %s183
      %s187 = sphi 0, %s186
      %s203 = sphi 0, %s187
    $region4: #{tpu_custom_call.1} parent=1 // loop_header_branch
      %24 = sbr.rel (%p22) target = $region8
    $region5: #{tpu_custom_call.1} parent=1 // loop_body
      %s26 = ssub.s32 %s21, 1
      %s27 = ssub.s32 %s21, 2
      %s28 = sadd.s32 %s21, 1
      %s29 = ssub.s32 %s21, %s28
      %p30 = scmp.eq.s32.totalorder %s29, 0
      %s32 = sadd.s32 %s31, 1
      %s33 = scalar_select %p30, %s31, %s32
      %p36 = pneg %p30
      %p37 = scmp.eq.s32.totalorder %s21, 1
      %p38 = por %p36, %p37
      %p39 = scmp.ne.s32.totalorder %s31, %s34
      %p40 = scmp.eq.s32.totalorder %s21, 0
      %p41 = por %p39, %p40
      %p42 = scmp.ne.s32.totalorder %s31, %s34
      %p43 = scmp.eq.s32.totalorder %s26, 1
      %p44 = por %p42, %p43
      %p45 = scmp.ne.s32.totalorder %s34, %s35
      %p46 = scmp.eq.s32.totalorder %s26, 0
      %p47 = por %p45, %p46
      %p48 = scmp.ne.s32.totalorder %s34, %s35
      %p49 = scmp.eq.s32.totalorder %s27, 1
      %p50 = por %p48, %p49
      %p52 = scmp.ne.s32.totalorder %s35, %s51
      %p53 = scmp.eq.s32.totalorder %s27, 0
      %p54 = por %p52, %p53
      %s56 = sadd.s32 %s55, 1
      %p59 = scmp.eq.s32.totalorder %s21, 1
      %p60 = scmp.ne.s32.totalorder %s55, %s57
      %p61 = scmp.eq.s32.totalorder %s21, 0
      %p62 = por %p60, %p61
      %p63 = scmp.ne.s32.totalorder %s55, %s57
      %p64 = scmp.eq.s32.totalorder %s26, 1
      %p65 = por %p63, %p64
      %p66 = scmp.ne.s32.totalorder %s57, %s58
      %p67 = scmp.eq.s32.totalorder %s26, 0
      %p68 = por %p66, %p67
      %p69 = scmp.ne.s32.totalorder %s57, %s58
      %p70 = scmp.eq.s32.totalorder %s27, 1
      %p71 = por %p69, %p70
      %p73 = scmp.ne.s32.totalorder %s58, %s72
      %p74 = scmp.eq.s32.totalorder %s27, 0
      %p75 = por %p73, %p74
      %s77 = sadd.s32 %s76, 1
      %p80 = scmp.eq.s32.totalorder %s21, 1
      %p81 = scmp.ne.s32.totalorder %s76, %s78
      %p82 = scmp.eq.s32.totalorder %s21, 0
      %p83 = por %p81, %p82
      %p84 = scmp.ne.s32.totalorder %s76, %s78
      %p85 = scmp.eq.s32.totalorder %s26, 1
      %p86 = por %p84, %p85
      %p87 = scmp.ne.s32.totalorder %s78, %s79
      %p88 = scmp.eq.s32.totalorder %s26, 0
      %p89 = por %p87, %p88
      %p90 = scmp.ne.s32.totalorder %s78, %s79
      %p91 = scmp.eq.s32.totalorder %s27, 1
      %p92 = por %p90, %p91
      %p94 = scmp.ne.s32.totalorder %s79, %s93
      %p95 = scmp.eq.s32.totalorder %s27, 0
      %p96 = por %p94, %p95
      %s98 = sadd.s32 %s97, 1
      %p101 = scmp.eq.s32.totalorder %s21, 1
      %p102 = scmp.ne.s32.totalorder %s97, %s99
      %p103 = scmp.eq.s32.totalorder %s21, 0
      %p104 = por %p102, %p103
      %p105 = scmp.ne.s32.totalorder %s97, %s99
      %p106 = scmp.eq.s32.totalorder %s26, 1
      %p107 = por %p105, %p106
      %p108 = scmp.ne.s32.totalorder %s99, %s100
      %p109 = scmp.eq.s32.totalorder %s26, 0
      %p110 = por %p108, %p109
      %p111 = scmp.ne.s32.totalorder %s99, %s100
      %p112 = scmp.eq.s32.totalorder %s27, 1
      %p113 = por %p111, %p112
      %p115 = scmp.ne.s32.totalorder %s100, %s114
      %p116 = scmp.eq.s32.totalorder %s27, 0
      %p117 = por %p115, %p116
      %s119 = sadd.s32 %s118, 1
      %p122 = scmp.eq.s32.totalorder %s21, 1
      %p123 = scmp.ne.s32.totalorder %s118, %s120
      %p124 = scmp.eq.s32.totalorder %s21, 0
      %p125 = por %p123, %p124
      %p126 = scmp.ne.s32.totalorder %s118, %s120
      %p127 = scmp.eq.s32.totalorder %s26, 1
      %p128 = por %p126, %p127
      %p129 = scmp.ne.s32.totalorder %s120, %s121
      %p130 = scmp.eq.s32.totalorder %s26, 0
      %p131 = por %p129, %p130
      %p132 = scmp.ne.s32.totalorder %s120, %s121
      %p133 = scmp.eq.s32.totalorder %s27, 1
      %p134 = por %p132, %p133
      %p136 = scmp.ne.s32.totalorder %s121, %s135
      %p137 = scmp.eq.s32.totalorder %s27, 0
      %p138 = por %p136, %p137
      %s140 = sadd.s32 %s139, 1
      %p143 = scmp.eq.s32.totalorder %s21, 1
      %p144 = scmp.ne.s32.totalorder %s139, %s141
      %p145 = scmp.eq.s32.totalorder %s21, 0
      %p146 = por %p144, %p145
      %p147 = scmp.ne.s32.totalorder %s139, %s141
      %p148 = scmp.eq.s32.totalorder %s26, 1
      %p149 = por %p147, %p148
      %p150 = scmp.ne.s32.totalorder %s141, %s142
      %p151 = scmp.eq.s32.totalorder %s26, 0
      %p152 = por %p150, %p151
      %p153 = scmp.ne.s32.totalorder %s141, %s142
      %p154 = scmp.eq.s32.totalorder %s27, 1
      %p155 = por %p153, %p154
      %p157 = scmp.ne.s32.totalorder %s142, %s156
      %p158 = scmp.eq.s32.totalorder %s27, 0
      %p159 = por %p157, %p158
      %s161 = sadd.s32 %s160, 1
      %p164 = scmp.eq.s32.totalorder %s21, 1
      %p165 = scmp.ne.s32.totalorder %s160, %s162
      %p166 = scmp.eq.s32.totalorder %s21, 0
      %p167 = por %p165, %p166
      %p168 = scmp.ne.s32.totalorder %s160, %s162
      %p169 = scmp.eq.s32.totalorder %s26, 1
      %p170 = por %p168, %p169
      %p171 = scmp.ne.s32.totalorder %s162, %s163
      %p172 = scmp.eq.s32.totalorder %s26, 0
      %p173 = por %p171, %p172
      %p174 = scmp.ne.s32.totalorder %s162, %s163
      %p175 = scmp.eq.s32.totalorder %s27, 1
      %p176 = por %p174, %p175
      %p178 = scmp.ne.s32.totalorder %s163, %s177
      %p179 = scmp.eq.s32.totalorder %s27, 0
      %p180 = por %p178, %p179
      %s181 = ssub.s32 %s21, %s28
      %p182 = scmp.eq.s32.totalorder %s181, 0
      %s184 = sadd.s32 %s183, 1
      %s185 = scalar_select %p182, %s183, %s184
      %p188 = pneg %p182
      %p189 = scmp.eq.s32.totalorder %s21, 1
      %p190 = por %p188, %p189
      %p191 = scmp.ne.s32.totalorder %s183, %s186
      %p192 = scmp.eq.s32.totalorder %s21, 0
      %p193 = por %p191, %p192
      %p194 = scmp.ne.s32.totalorder %s183, %s186
      %p195 = scmp.eq.s32.totalorder %s26, 1
      %p196 = por %p194, %p195
      %p197 = scmp.ne.s32.totalorder %s186, %s187
      %p198 = scmp.eq.s32.totalorder %s26, 0
      %p199 = por %p197, %p198
      %p200 = scmp.ne.s32.totalorder %s186, %s187
      %p201 = scmp.eq.s32.totalorder %s27, 1
      %p202 = por %p200, %p201
      %p204 = scmp.ne.s32.totalorder %s187, %s203
      %p205 = scmp.eq.s32.totalorder %s27, 0
      %p206 = por %p204, %p205
      %p207 = scmp.le.s32.totalorder 1, %s21
      %p208 = scmp.lt.s32.totalorder %s21, 3
      %p209 = pnand %p207, %p208
      %p210 = pneg %p209
      // Predicated region
      $region9: #{tpu_custom_call.1} parent=5 // pred_check
        _
      $region10: #{tpu_custom_call.1} parent=5 // pred_check_branch
        %212 = sbr.rel (%p209) target = $region12
      $region11: #{tpu_custom_call.1} parent=5 // pred_region
        %s213 = ssub.s32 %s21, 1
        // Predicated region
        $region13: #{tpu_custom_call.1} parent=11 // pred_check
          %p214 = pneg %p68
        $region14: #{tpu_custom_call.1} parent=11 // pred_check_branch
          %216 = sbr.rel (%p214) target = $region16
        $region15: #{tpu_custom_call.1} parent=11 // pred_region
          %s218 = ssub.s32 2048, 2048
          %219 = vsyncadd [#allocation7], %s218
          %s220 = sshll.u32 [#allocation6], 4
          %s221 = int_to_ptr.vmem [resolvable:$true] %s220
          %226 = dma.hbm_to_vmem [thread:$0]  %s1, 2048, %s221, [#allocation7], 128, 128, 8
        $region16: #{tpu_custom_call.1} parent=11 // pred_fallthru
          _
        // Predicated region
        $region17: #{tpu_custom_call.1} parent=11 // pred_check
          %p227 = pneg %p89
        $region18: #{tpu_custom_call.1} parent=11 // pred_check_branch
          %229 = sbr.rel (%p227) target = $region20
        $region19: #{tpu_custom_call.1} parent=11 // pred_region
          %s231 = ssub.s32 32, 32
          %232 = vsyncadd [#allocation7], %s231
          %s234 = sshll.u32 [#allocation8], 4
          %s235 = int_to_ptr.vmem [resolvable:$true] %s234
          %237 = dma.hbm_to_vmem [thread:$0]  %s2, 32, %s235, [#allocation7]
        $region20: #{tpu_custom_call.1} parent=11 // pred_fallthru
          _
        // Predicated region
        $region21: #{tpu_custom_call.1} parent=11 // pred_check
          %p238 = pneg %p110
        $region22: #{tpu_custom_call.1} parent=11 // pred_check_branch
          %240 = sbr.rel (%p238) target = $region24
        $region23: #{tpu_custom_call.1} parent=11 // pred_region
          %s242 = ssub.s32 1024, 1024
          %243 = vsyncadd [#allocation10], %s242
          %s244 = sshll.u32 [#allocation9], 4
          %s245 = int_to_ptr.vmem [resolvable:$true] %s244
          %250 = dma.hbm_to_vmem [thread:$0]  %s3, 1024, %s245, [#allocation10], 64, 64, 4
        $region24: #{tpu_custom_call.1} parent=11 // pred_fallthru
          _
        // Predicated region
        $region25: #{tpu_custom_call.1} parent=11 // pred_check
          %p251 = pneg %p131
        $region26: #{tpu_custom_call.1} parent=11 // pred_check_branch
          %253 = sbr.rel (%p251) target = $region28
        $region27: #{tpu_custom_call.1} parent=11 // pred_region
          _
        $region28: #{tpu_custom_call.1} parent=11 // pred_fallthru
          _
        // Predicated region
        $region29: #{tpu_custom_call.1} parent=11 // pred_check
          %p254 = pneg %p152
        $region30: #{tpu_custom_call.1} parent=11 // pred_check_branch
          %256 = sbr.rel (%p254) target = $region32
        $region31: #{tpu_custom_call.1} parent=11 // pred_region
          _
        $region32: #{tpu_custom_call.1} parent=11 // pred_fallthru
          _
        // Predicated region
        $region33: #{tpu_custom_call.1} parent=11 // pred_check
          %p257 = pneg %p173
        $region34: #{tpu_custom_call.1} parent=11 // pred_check_branch
          %259 = sbr.rel (%p257) target = $region36
        $region35: #{tpu_custom_call.1} parent=11 // pred_region
          %s261 = ssub.s32 128, 128
          %262 = vsyncadd [#allocation10], %s261
          %s264 = sshll.u32 [#allocation11], 4
          %s265 = int_to_ptr.vmem [resolvable:$true] %s264
          %267 = dma.hbm_to_vmem [thread:$0]  %s6, 128, %s265, [#allocation10]
        $region36: #{tpu_custom_call.1} parent=11 // pred_fallthru
          _
      $region12: #{tpu_custom_call.1} parent=5 // pred_fallthru
        _
      %p268 = scmp.lt.s32.totalorder %s21, 2
      // Predicated region
      $region37: #{tpu_custom_call.1} parent=5 // pred_check
        %p269 = pneg %p268
      $region38: #{tpu_custom_call.1} parent=5 // pred_check_branch
        %271 = sbr.rel (%p269) target = $region40
      $region39: #{tpu_custom_call.1} parent=5 // pred_region
        // Predicated region
        $region41: #{tpu_custom_call.1} parent=39 // pred_check
          %p272 = pneg %p41
        $region42: #{tpu_custom_call.1} parent=39 // pred_check_branch
          %274 = sbr.rel (%p272) target = $region44
        $region43: #{tpu_custom_call.1} parent=39 // pred_region
          %s275 = sand.u32 %s31, 1
          %s276 = scalar_lea.sflag [#allocation4], %s275
          %s277 = sand.u32 %s31, 1
          %s278 = smul.addr %s277, 8
          %s279 = scalar_lea.vmem [#allocation3], %s278
          %s281 = ssub.s32 128, 128
          %282 = vsyncadd %s276, %s281
          %s283 = smul.addr %s21, 128
          %s284 = scalar_lea.hbm %s0, %s283
          %s286 = sshll.u32 %s279, 4
          %s287 = int_to_ptr.vmem [resolvable:$true] %s286
          %289 = dma.hbm_to_vmem [thread:$0]  %s284, 128, %s287, %s276
        $region44: #{tpu_custom_call.1} parent=39 // pred_fallthru
          _
      $region40: #{tpu_custom_call.1} parent=5 // pred_fallthru
        _
      %p290 = scmp.le.s32.totalorder 1, %s21
      %p291 = scmp.lt.s32.totalorder %s21, 3
      %p292 = pnand %p290, %p291
      %p293 = pneg %p292
      // Predicated region
      $region45: #{tpu_custom_call.1} parent=5 // pred_check
        _
      $region46: #{tpu_custom_call.1} parent=5 // pred_check_branch
        %295 = sbr.rel (%p292) target = $region48
      $region47: #{tpu_custom_call.1} parent=5 // pred_region
        %s296 = ssub.s32 %s21, 1
        %s297 = sand.u32 %s34, 1
        %s298 = scalar_lea.sflag [#allocation4], %s297
        %s299 = sand.u32 %s34, 1
        %s300 = smul.addr %s299, 8
        %s301 = scalar_lea.vmem [#allocation3], %s300
        // Predicated region
        $region49: #{tpu_custom_call.1} parent=47 // pred_check
          %p302 = pneg %p47
        $region50: #{tpu_custom_call.1} parent=47 // pred_check_branch
          %304 = sbr.rel (%p302) target = $region52
        $region51: #{tpu_custom_call.1} parent=47 // pred_region
          %305 = dma.done %s298, 128
        $region52: #{tpu_custom_call.1} parent=47 // pred_fallthru
          _
        // Predicated region
        $region53: #{tpu_custom_call.1} parent=47 // pred_check
          %p306 = pneg %p68
        $region54: #{tpu_custom_call.1} parent=47 // pred_check_branch
          %308 = sbr.rel (%p306) target = $region56
        $region55: #{tpu_custom_call.1} parent=47 // pred_region
          %309 = dma.done [#allocation7], 2048
        $region56: #{tpu_custom_call.1} parent=47 // pred_fallthru
          _
        // Predicated region
        $region57: #{tpu_custom_call.1} parent=47 // pred_check
          %p310 = pneg %p89
        $region58: #{tpu_custom_call.1} parent=47 // pred_check_branch
          %312 = sbr.rel (%p310) target = $region60
        $region59: #{tpu_custom_call.1} parent=47 // pred_region
          %313 = dma.done [#allocation7], 32
        $region60: #{tpu_custom_call.1} parent=47 // pred_fallthru
          _
        // Predicated region
        $region61: #{tpu_custom_call.1} parent=47 // pred_check
          %p314 = pneg %p110
        $region62: #{tpu_custom_call.1} parent=47 // pred_check_branch
          %316 = sbr.rel (%p314) target = $region64
        $region63: #{tpu_custom_call.1} parent=47 // pred_region
          %317 = dma.done [#allocation10], 1024
        $region64: #{tpu_custom_call.1} parent=47 // pred_fallthru
          _
        // Predicated region
        $region65: #{tpu_custom_call.1} parent=47 // pred_check
          %p318 = pneg %p173
        $region66: #{tpu_custom_call.1} parent=47 // pred_check_branch
          %320 = sbr.rel (%p318) target = $region68
        $region67: #{tpu_custom_call.1} parent=47 // pred_region
          %321 = dma.done [#allocation10], 128
        $region68: #{tpu_custom_call.1} parent=47 // pred_fallthru
          _
        %s322 = sand.u32 %s34, 1
        %s323 = scalar_lea.sflag [#allocation4], %s322
        %s324 = sand.u32 %s34, 1
        %s325 = smul.addr %s324, 8
        %s326 = scalar_lea.vmem [#allocation3], %s325
        %p327 = pneg %p47
        %p328 = pneg %p44
        %p329 = pneg %p68
        %p330 = pneg %p65
        %p331 = pneg %p89
        %p332 = pneg %p86
        %p333 = pneg %p110
        %p334 = pneg %p107
        %p335 = pneg %p131
        %p336 = pneg %p128
        %p337 = pneg %p152
        %p338 = pneg %p149
        %p339 = pneg %p173
        %p340 = pneg %p170
        %p341 = pneg %p199
        %p342 = pneg %p196
        %s343 = sand.u32 %s186, 1
        %s344 = scalar_lea.sflag [#allocation5], %s343
        %s345 = sand.u32 %s186, 1
        %s346 = smul.addr %s345, 8
        %s347 = scalar_lea.vmem [#allocation12], %s346
        %v349 = vld [vmem:[%s301] sm:$0xff]
        %v350 = vpack.c.bf16 %v349, %v349
        %v351 = vld [vmem:[#allocation6] sm:$0xff]
        %v352 = vld [vmem:[#allocation6 + $0x8] sm:$0xff]
        %v353 = vld [vmem:[#allocation6 + $0x10] sm:$0xff]
        %v354 = vld [vmem:[#allocation6 + $0x18] sm:$0xff]
        %v355 = vld [vmem:[#allocation6 + $0x20] sm:$0xff]
        %v356 = vld [vmem:[#allocation6 + $0x28] sm:$0xff]
        %v357 = vld [vmem:[#allocation6 + $0x30] sm:$0xff]
        %v358 = vld [vmem:[#allocation6 + $0x38] sm:$0xff]
        %v359 = vld [vmem:[#allocation6 + $0x40] sm:$0xff]
        %v360 = vld [vmem:[#allocation6 + $0x48] sm:$0xff]
        %v361 = vld [vmem:[#allocation6 + $0x50] sm:$0xff]
        %v362 = vld [vmem:[#allocation6 + $0x58] sm:$0xff]
        %v363 = vld [vmem:[#allocation6 + $0x60] sm:$0xff]
        %v364 = vld [vmem:[#allocation6 + $0x68] sm:$0xff]
        %v365 = vld [vmem:[#allocation6 + $0x70] sm:$0xff]
        %v366 = vld [vmem:[#allocation6 + $0x78] sm:$0xff]
        %v367 = vld [vmem:[#allocation8] sm:$0x3]
        %v369 = vlaneseq
        %v370 = vshrl.u32 %v369, 7
        %v371 = vsub.s32 0, %v370
        %v372 = vrot.slane %v367, %v371
        %v373 = vlaneseq
        %v374 = vshrl.u32 %v373, 7
        %v375 = vsub.s32 1, %v374
        %v376 = vrot.slane %v367, %v375
        %v395 = vunpack.c.l.b16 %v351
        %v396 = vunpack.c.h.b16 %v351
        %v397 = vunpack.c.l.b16 %v352
        %v398 = vunpack.c.h.b16 %v352
        %v399 = vunpack.c.l.b16 %v353
        %v400 = vunpack.c.h.b16 %v353
        %v401 = vunpack.c.l.b16 %v354
        %v402 = vunpack.c.h.b16 %v354
        %v403 = vunpack.c.l.b16 %v355
        %v404 = vunpack.c.h.b16 %v355
        %v405 = vunpack.c.l.b16 %v356
        %v406 = vunpack.c.h.b16 %v356
        %v407 = vunpack.c.l.b16 %v357
        %v408 = vunpack.c.h.b16 %v357
        %v409 = vunpack.c.l.b16 %v358
        %v410 = vunpack.c.h.b16 %v358
        %v411 = vunpack.c.l.b16 %v359
        %v412 = vunpack.c.h.b16 %v359
        %v413 = vunpack.c.l.b16 %v360
        %v414 = vunpack.c.h.b16 %v360
        %v415 = vunpack.c.l.b16 %v361
        %v416 = vunpack.c.h.b16 %v361
        %v417 = vunpack.c.l.b16 %v362
        %v418 = vunpack.c.h.b16 %v362
        %v419 = vunpack.c.l.b16 %v363
        %v420 = vunpack.c.h.b16 %v363
        %v421 = vunpack.c.l.b16 %v364
        %v422 = vunpack.c.h.b16 %v364
        %v423 = vunpack.c.l.b16 %v365
        %v424 = vunpack.c.h.b16 %v365
        %v425 = vunpack.c.l.b16 %v366
        %v426 = vunpack.c.h.b16 %v366
        %v427 = vpack.c.b16 %v397, %v395
        %v428 = vpack.c.b16 %v398, %v396
        %v429 = vpack.c.b16 %v401, %v399
        %v430 = vpack.c.b16 %v402, %v400
        %v431 = vpack.c.b16 %v405, %v403
        %v432 = vpack.c.b16 %v406, %v404
        %v433 = vpack.c.b16 %v409, %v407
        %v434 = vpack.c.b16 %v410, %v408
        %v435 = vpack.c.b16 %v413, %v411
        %v436 = vpack.c.b16 %v414, %v412
        %v437 = vpack.c.b16 %v417, %v415
        %v438 = vpack.c.b16 %v418, %v416
        %v439 = vpack.c.b16 %v421, %v419
        %v440 = vpack.c.b16 %v422, %v420
        %v441 = vpack.c.b16 %v425, %v423
        %v442 = vpack.c.b16 %v426, %v424
        %459 = vmatprep.subr.bf16.mxu0 %v442
        %460 = vmatpush1.bf16.msra.mxu0 %v441
        %461 = vmatprep.subr.bf16.mxu0 %v440
        %462 = vmatpush1.bf16.msra.mxu0 %v439
        %463 = vmatprep.subr.bf16.mxu0 %v438
        %464 = vmatpush1.bf16.msra.mxu0 %v437
        %465 = vmatprep.subr.bf16.mxu0 %v436
        %466 = vmatpush1.bf16.msra.mxu0 %v435
        %467 = vmatprep.subr.bf16.mxu0 %v434
        %468 = vmatpush1.bf16.msra.mxu0 %v433
        %469 = vmatprep.subr.bf16.mxu0 %v432
        %470 = vmatpush1.bf16.msra.mxu0 %v431
        %471 = vmatprep.subr.bf16.mxu0 %v430
        %472 = vmatpush1.bf16.msra.mxu0 %v429
        %473 = vmatprep.subr.bf16.mxu0 %v428
        %474 = vmatpush1.bf16.msra.mxu0 %v427
        %475 = vmatprep.subr.bf16.mxu0 0
        %476 = vmatpush2.bf16.msra.mxu0 0
        %477 = vmatprep.subr.bf16.mxu0 0
        %478 = vmatpush2.bf16.msra.mxu0 0
        %479 = vmatprep.subr.bf16.mxu0 0
        %480 = vmatpush2.bf16.msra.mxu0 0
        %481 = vmatprep.subr.bf16.mxu0 0
        %482 = vmatpush2.bf16.msra.mxu0 0
        %483 = vmatprep.subr.bf16.mxu0 0
        %484 = vmatpush2.bf16.msra.mxu0 0
        %485 = vmatprep.subr.bf16.mxu0 0
        %486 = vmatpush2.bf16.msra.mxu0 0
        %487 = vmatprep.subr.bf16.mxu0 0
        %488 = vmatpush2.bf16.msra.mxu0 0
        %489 = vmatprep.subr.bf16.mxu0 0
        %490 = vmatpush2.bf16.msra.mxu0 0
        %491 = vmatprep.mubr.bf16.mxu0 0
        %492 = vmatmul.mubr.bf16.gmra.mxu0 %v350
        %v493 = vpop.f32.mrf.mxu0
        %v494 = vadd.f32 %v372, %v493
        %v495 = vpop.f32.mrf.mxu0
        %v496 = vadd.f32 %v376, %v495
        %v497 = vpop.f32.mrf.mxu0
        %v498 = vpop.f32.mrf.mxu0
        %499 = vdwg.mxu0
        %v500 = vld [vmem:[%s5] sm:$0xff]
        %v501 = vld [vmem:[#allocation11] sm:$0xff]
        %v502 = vlaneseq
        %v503 = vshrl.u32 %v502, 7
        %v504 = vlaneseq
        %v505 = vand.u32 %v504, 127
        %vm506 = vcmp.ge.s32.totalorder %v503, %v505
        %v507 = vsel %vm506, 1, 0
        %v508 = vcvt.s32.f32 %v507
        %510 = vrot.lane.b32.xlu0 %v500, 64
        %v511 = vpop.permute.xlu0 %510
        %v513 = vmul.f32 %v494, %v511
        %515 = vrot.lane.b32.xlu0 %v501, 80
        %v516 = vpop.permute.xlu0 %515
        %v518 = vmul.f32 %v494, %v516
        %520 = vrot.lane.b32.xlu0 %v518, 112
        %v521 = vpop.permute.xlu0 %520
        %v523 = vsub.f32 %v513, %v521
        %524 = vrot.lane.b32.xlu0 %v501, 64
        %v525 = vpop.permute.xlu0 %524
        %v527 = vmul.f32 %v494, %v525
        %528 = vrot.lane.b32.xlu0 %v500, 80
        %v529 = vpop.permute.xlu0 %528
        %v531 = vmul.f32 %v494, %v529
        %533 = vrot.lane.b32.xlu0 %v531, 112
        %v534 = vpop.permute.xlu0 %533
        %v536 = vadd.f32 %v527, %v534
        %538 = vrot.lane.b32.xlu0 %v523, 64
        %v539 = vpop.permute.xlu0 %538
        %542 = vrot.lane.b32.xlu0 %v536, 80
        %v543 = vpop.permute.xlu0 %542
        %vm545 = vcmask 130048
        %v546 = vsel %vm545, %v539, %v543
        %vm547 = vcmp.gt.f32.partialorder %v546, 0.0
        %v548 = vmin.f32 %v546, 0.0
        %v549 = vmul.f32 %v548, 1.442695
        %v550 = vpow.pop %v549
        %v551 = vsub.f32 %v550, 1.0
        %v552 = vsel %vm547, %v546, %v551
        %v553 = vadd.f32 %v552, 1.0
        %v554 = vpack.c.bf16 %v553, %v553
        %v555 = vpack.c.bf16 %v494, %v494
        %v556 = vmul.f32 %v494, %v500
        %557 = vrot.lane.b32.xlu0 %v501, 16
        %v558 = vpop.permute.xlu0 %557
        %v560 = vmul.f32 %v494, %v558
        %562 = vrot.lane.b32.xlu0 %v560, 112
        %v563 = vpop.permute.xlu0 %562
        %v565 = vsub.f32 %v556, %v563
        %v566 = vmul.f32 %v494, %v501
        %567 = vrot.lane.b32.xlu0 %v500, 16
        %v568 = vpop.permute.xlu0 %567
        %v570 = vmul.f32 %v494, %v568
        %572 = vrot.lane.b32.xlu0 %v570, 112
        %v573 = vpop.permute.xlu0 %572
        %v575 = vadd.f32 %v566, %v573
        %577 = vrot.lane.b32.xlu0 %v575, 16
        %v578 = vpop.permute.xlu0 %577
        %v580 = vsel %vm545, %v565, %v578
        %vm581 = vcmp.gt.f32.partialorder %v580, 0.0
        %v582 = vmin.f32 %v580, 0.0
        %v583 = vmul.f32 %v582, 1.442695
        %v584 = vpow.pop %v583
        %v585 = vsub.f32 %v584, 1.0
        %v586 = vsel %vm581, %v580, %v585
        %v587 = vadd.f32 %v586, 1.0
        %v588 = vmul.f32 %v587, 0.17677669
        %589 = vrot.lane.b32.xlu0 %v500, 32
        %v590 = vpop.permute.xlu0 %589
        %v592 = vmul.f32 %v494, %v590
        %593 = vrot.lane.b32.xlu0 %v501, 48
        %v594 = vpop.permute.xlu0 %593
        %v596 = vmul.f32 %v494, %v594
        %598 = vrot.lane.b32.xlu0 %v596, 112
        %v599 = vpop.permute.xlu0 %598
        %v601 = vsub.f32 %v592, %v599
        %602 = vrot.lane.b32.xlu0 %v501, 32
        %v603 = vpop.permute.xlu0 %602
        %v605 = vmul.f32 %v494, %v603
        %606 = vrot.lane.b32.xlu0 %v500, 48
        %v607 = vpop.permute.xlu0 %606
        %v609 = vmul.f32 %v494, %v607
        %611 = vrot.lane.b32.xlu0 %v609, 112
        %v612 = vpop.permute.xlu0 %611
        %v614 = vadd.f32 %v605, %v612
        %616 = vrot.lane.b32.xlu0 %v601, 96
        %v617 = vpop.permute.xlu0 %616
        %620 = vrot.lane.b32.xlu0 %v614, 112
        %v621 = vpop.permute.xlu0 %620
        %v623 = vsel %vm545, %v617, %v621
        %vm624 = vcmp.gt.f32.partialorder %v623, 0.0
        %v625 = vmin.f32 %v623, 0.0
        %v626 = vmul.f32 %v625, 1.442695
        %v627 = vpow.pop %v626
        %v628 = vsub.f32 %v627, 1.0
        %v629 = vsel %vm624, %v623, %v628
        %v630 = vadd.f32 %v629, 1.0
        %v631 = vmul.f32 %v630, 0.17677669
        %v632 = vpack.c.bf16 %v631, %v588
        %vm633 = vcmask 261120
        %v635 = vsel %vm633, %v632, 0
        %v638 = vsel %vm633, %v554, 0
        %640 = vmatprep.subr.bf16.mxu0 0
        %641 = vmatpush1.bf16.xpose.msra.mxu0 0
        %642 = vmatprep.subr.bf16.mxu0 0
        %643 = vmatpush1.bf16.xpose.msra.mxu0 0
        %644 = vmatprep.subr.bf16.mxu0 0
        %645 = vmatpush1.bf16.xpose.msra.mxu0 0
        %646 = vmatprep.subr.bf16.mxu0 0
        %647 = vmatpush1.bf16.xpose.msra.mxu0 0
        %648 = vmatprep.subr.bf16.mxu0 0
        %649 = vmatpush1.bf16.xpose.msra.mxu0 0
        %650 = vmatprep.subr.bf16.mxu0 0
        %651 = vmatpush1.bf16.xpose.msra.mxu0 0
        %652 = vmatprep.subr.bf16.mxu0 0
        %653 = vmatpush1.bf16.xpose.msra.mxu0 0
        %654 = vmatprep.subr.bf16.mxu0 0
        %655 = vmatpush1.bf16.xpose.msra.mxu0 %v638
        %656 = vmatprep.subr.bf16.mxu0 0
        %657 = vmatpush2.bf16.xpose.msra.mxu0 0
        %658 = vmatprep.subr.bf16.mxu0 0
        %659 = vmatpush2.bf16.xpose.msra.mxu0 0
        %660 = vmatprep.subr.bf16.mxu0 0
        %661 = vmatpush2.bf16.xpose.msra.mxu0 0
        %662 = vmatprep.subr.bf16.mxu0 0
        %663 = vmatpush2.bf16.xpose.msra.mxu0 0
        %664 = vmatprep.subr.bf16.mxu0 0
        %665 = vmatpush2.bf16.xpose.msra.mxu0 0
        %666 = vmatprep.subr.bf16.mxu0 0
        %667 = vmatpush2.bf16.xpose.msra.mxu0 0
        %668 = vmatprep.subr.bf16.mxu0 0
        %669 = vmatpush2.bf16.xpose.msra.mxu0 0
        %670 = vmatprep.subr.bf16.mxu0 0
        %671 = vmatpush2.bf16.xpose.msra.mxu0 0
        %672 = vmatprep.mubr.bf16.mxu0 0
        %673 = vmatmul.mubr.bf16.gmra.mxu0 %v635
        %v674 = vpop.f32.mrf.mxu0
        %v675 = vadd.f32 0.0, %v674
        %v676 = vpop.f32.mrf.mxu0
        %v677 = vpop.f32.mrf.mxu0
        %v678 = vadd.f32 0.0, %v677
        %v679 = vpop.f32.mrf.mxu0
        %680 = vdwg.mxu0
        %v681 = vmul.f32 %v675, %v508
        %v682 = vmul.f32 %v678, %v508
        %vm683 = vcmask 64512
        %v684 = vsel %vm683, %v681, 0.0
        %685 = vadd.xlane.f32.xlu0 %v684
        %v686 = vpop.xlane.xlu0 %685
        %v687 = vsel %vm683, %v682, 0.0
        %688 = vadd.xlane.f32.xlu0 %v687
        %v689 = vpop.xlane.xlu0 %688
        %v690 = vadd.f32 %v686, 1e-08
        %v691 = vadd.f32 %v689, 1e-08
        %v692 = vrcp.pop %v690
        %v693 = vrcp.pop %v691
        %v694 = vmul.f32 %v681, %v692
        %v695 = vmul.f32 %v682, %v693
        %v696 = vpack.c.bf16 %v695, %v694
        %698 = vrot.lane.b32.xlu0 %v555, 32
        %v699 = vpop.permute.xlu0 %698
        %v701 = vsel %vm683, %v696, 0
        %vm703 = vcmask 1043456
        %v705 = vsel %vm703, %v699, 0
        %707 = vmatprep.subr.bf16.mxu0 0
        %708 = vmatpush1.bf16.msra.mxu0 0
        %709 = vmatprep.subr.bf16.mxu0 0
        %710 = vmatpush1.bf16.msra.mxu0 0
        %711 = vmatprep.subr.bf16.mxu0 0
        %712 = vmatpush1.bf16.msra.mxu0 0
        %713 = vmatprep.subr.bf16.mxu0 0
        %714 = vmatpush1.bf16.msra.mxu0 0
        %715 = vmatprep.subr.bf16.mxu0 0
        %716 = vmatpush1.bf16.msra.mxu0 0
        %717 = vmatprep.subr.bf16.mxu0 0
        %718 = vmatpush1.bf16.msra.mxu0 0
        %719 = vmatprep.subr.bf16.mxu0 0
        %720 = vmatpush1.bf16.msra.mxu0 0
        %721 = vmatprep.subr.bf16.mxu0 0
        %722 = vmatpush1.bf16.msra.mxu0 %v705
        %723 = vmatprep.subr.bf16.mxu0 0
        %724 = vmatpush2.bf16.msra.mxu0 0
        %725 = vmatprep.subr.bf16.mxu0 0
        %726 = vmatpush2.bf16.msra.mxu0 0
        %727 = vmatprep.subr.bf16.mxu0 0
        %728 = vmatpush2.bf16.msra.mxu0 0
        %729 = vmatprep.subr.bf16.mxu0 0
        %730 = vmatpush2.bf16.msra.mxu0 0
        %731 = vmatprep.subr.bf16.mxu0 0
        %732 = vmatpush2.bf16.msra.mxu0 0
        %733 = vmatprep.subr.bf16.mxu0 0
        %734 = vmatpush2.bf16.msra.mxu0 0
        %735 = vmatprep.subr.bf16.mxu0 0
        %736 = vmatpush2.bf16.msra.mxu0 0
        %737 = vmatprep.subr.bf16.mxu0 0
        %738 = vmatpush2.bf16.msra.mxu0 0
        %739 = vmatprep.mubr.bf16.mxu0 0
        %740 = vmatmul.mubr.bf16.gmra.mxu0 %v701
        %v741 = vpop.f32.mrf.mxu0
        %v742 = vadd.f32 0.0, %v741
        %v743 = vpop.f32.mrf.mxu0
        %v744 = vpop.f32.mrf.mxu0
        %v745 = vadd.f32 0.0, %v744
        %v746 = vpop.f32.mrf.mxu0
        %747 = vdwg.mxu0
        %749 = vrot.lane.b32.xlu0 %v745, 32
        %v750 = vpop.permute.xlu0 %749
        %v752 = vsel %vm633, %v742, %v750
        %vm753 = vcmask 523264
        %754 = vst.msk [vmem:[#allocation2] sm:$0xff] %vm753, %v752
        %v755 = vmul.f32 %v496, %v511
        %v756 = vmul.f32 %v496, %v516
        %758 = vrot.lane.b32.xlu0 %v756, 112
        %v759 = vpop.permute.xlu0 %758
        %v761 = vsub.f32 %v755, %v759
        %v762 = vmul.f32 %v496, %v525
        %v763 = vmul.f32 %v496, %v529
        %765 = vrot.lane.b32.xlu0 %v763, 112
        %v766 = vpop.permute.xlu0 %765
        %v768 = vadd.f32 %v762, %v766
        %770 = vrot.lane.b32.xlu0 %v761, 64
        %v771 = vpop.permute.xlu0 %770
        %774 = vrot.lane.b32.xlu0 %v768, 80
        %v775 = vpop.permute.xlu0 %774
        %v777 = vsel %vm545, %v771, %v775
        %vm778 = vcmp.gt.f32.partialorder %v777, 0.0
        %v779 = vmin.f32 %v777, 0.0
        %v780 = vmul.f32 %v779, 1.442695
        %v781 = vpow.pop %v780
        %v782 = vsub.f32 %v781, 1.0
        %v783 = vsel %vm778, %v777, %v782
        %v784 = vadd.f32 %v783, 1.0
        %v785 = vpack.c.bf16 %v784, %v784
        %v786 = vpack.c.bf16 %v496, %v496
        %v787 = vmul.f32 %v496, %v500
        %v788 = vmul.f32 %v496, %v558
        %790 = vrot.lane.b32.xlu0 %v788, 112
        %v791 = vpop.permute.xlu0 %790
        %v793 = vsub.f32 %v787, %v791
        %v794 = vmul.f32 %v496, %v501
        %v795 = vmul.f32 %v496, %v568
        %797 = vrot.lane.b32.xlu0 %v795, 112
        %v798 = vpop.permute.xlu0 %797
        %v800 = vadd.f32 %v794, %v798
        %802 = vrot.lane.b32.xlu0 %v800, 16
        %v803 = vpop.permute.xlu0 %802
        %v805 = vsel %vm545, %v793, %v803
        %vm806 = vcmp.gt.f32.partialorder %v805, 0.0
        %v807 = vmin.f32 %v805, 0.0
        %v808 = vmul.f32 %v807, 1.442695
        %v809 = vpow.pop %v808
        %v810 = vsub.f32 %v809, 1.0
        %v811 = vsel %vm806, %v805, %v810
        %v812 = vadd.f32 %v811, 1.0
        %v813 = vmul.f32 %v812, 0.17677669
        %v814 = vmul.f32 %v496, %v590
        %v815 = vmul.f32 %v496, %v594
        %817 = vrot.lane.b32.xlu0 %v815, 112
        %v818 = vpop.permute.xlu0 %817
        %v820 = vsub.f32 %v814, %v818
        %v821 = vmul.f32 %v496, %v603
        %v822 = vmul.f32 %v496, %v607
        %824 = vrot.lane.b32.xlu0 %v822, 112
        %v825 = vpop.permute.xlu0 %824
        %v827 = vadd.f32 %v821, %v825
        %829 = vrot.lane.b32.xlu0 %v820, 96
        %v830 = vpop.permute.xlu0 %829
        %833 = vrot.lane.b32.xlu0 %v827, 112
        %v834 = vpop.permute.xlu0 %833
        %v836 = vsel %vm545, %v830, %v834
        %vm837 = vcmp.gt.f32.partialorder %v836, 0.0
        %v838 = vmin.f32 %v836, 0.0
        %v839 = vmul.f32 %v838, 1.442695
        %v840 = vpow.pop %v839
        %v841 = vsub.f32 %v840, 1.0
        %v842 = vsel %vm837, %v836, %v841
        %v843 = vadd.f32 %v842, 1.0
        %v844 = vmul.f32 %v843, 0.17677669
        %v845 = vpack.c.bf16 %v844, %v813
        %v847 = vsel %vm633, %v845, 0
        %v850 = vsel %vm633, %v785, 0
        %852 = vmatprep.subr.bf16.mxu0 0
        %853 = vmatpush1.bf16.xpose.msra.mxu0 0
        %854 = vmatprep.subr.bf16.mxu0 0
        %855 = vmatpush1.bf16.xpose.msra.mxu0 0
        %856 = vmatprep.subr.bf16.mxu0 0
        %857 = vmatpush1.bf16.xpose.msra.mxu0 0
        %858 = vmatprep.subr.bf16.mxu0 0
        %859 = vmatpush1.bf16.xpose.msra.mxu0 0
        %860 = vmatprep.subr.bf16.mxu0 0
        %861 = vmatpush1.bf16.xpose.msra.mxu0 0
        %862 = vmatprep.subr.bf16.mxu0 0
        %863 = vmatpush1.bf16.xpose.msra.mxu0 0
        %864 = vmatprep.subr.bf16.mxu0 0
        %865 = vmatpush1.bf16.xpose.msra.mxu0 0
        %866 = vmatprep.subr.bf16.mxu0 0
        %867 = vmatpush1.bf16.xpose.msra.mxu0 %v850
        %868 = vmatprep.subr.bf16.mxu0 0
        %869 = vmatpush2.bf16.xpose.msra.mxu0 0
        %870 = vmatprep.subr.bf16.mxu0 0
        %871 = vmatpush2.bf16.xpose.msra.mxu0 0
        %872 = vmatprep.subr.bf16.mxu0 0
        %873 = vmatpush2.bf16.xpose.msra.mxu0 0
        %874 = vmatprep.subr.bf16.mxu0 0
        %875 = vmatpush2.bf16.xpose.msra.mxu0 0
        %876 = vmatprep.subr.bf16.mxu0 0
        %877 = vmatpush2.bf16.xpose.msra.mxu0 0
        %878 = vmatprep.subr.bf16.mxu0 0
        %879 = vmatpush2.bf16.xpose.msra.mxu0 0
        %880 = vmatprep.subr.bf16.mxu0 0
        %881 = vmatpush2.bf16.xpose.msra.mxu0 0
        %882 = vmatprep.subr.bf16.mxu0 0
        %883 = vmatpush2.bf16.xpose.msra.mxu0 0
        %884 = vmatprep.mubr.bf16.mxu0 0
        %885 = vmatmul.mubr.bf16.gmra.mxu0 %v847
        %v886 = vpop.f32.mrf.mxu0
        %v887 = vadd.f32 0.0, %v886
        %v888 = vpop.f32.mrf.mxu0
        %v889 = vpop.f32.mrf.mxu0
        %v890 = vadd.f32 0.0, %v889
        %v891 = vpop.f32.mrf.mxu0
        %892 = vdwg.mxu0
        %v893 = vmul.f32 %v887, %v508
        %v894 = vmul.f32 %v890, %v508
        %v895 = vsel %vm683, %v893, 0.0
        %896 = vadd.xlane.f32.xlu0 %v895
        %v897 = vpop.xlane.xlu0 %896
        %v898 = vsel %vm683, %v894, 0.0
        %899 = vadd.xlane.f32.xlu0 %v898
        %v900 = vpop.xlane.xlu0 %899
        %v901 = vadd.f32 %v897, 1e-08
        %v902 = vadd.f32 %v900, 1e-08
        %v903 = vrcp.pop %v901
        %v904 = vrcp.pop %v902
        %v905 = vmul.f32 %v893, %v903
        %v906 = vmul.f32 %v894, %v904
        %v907 = vpack.c.bf16 %v906, %v905
        %909 = vrot.lane.b32.xlu0 %v786, 32
        %v910 = vpop.permute.xlu0 %909
        %v912 = vsel %vm683, %v907, 0
        %v915 = vsel %vm703, %v910, 0
        %917 = vmatprep.subr.bf16.mxu0 0
        %918 = vmatpush1.bf16.msra.mxu0 0
        %919 = vmatprep.subr.bf16.mxu0 0
        %920 = vmatpush1.bf16.msra.mxu0 0
        %921 = vmatprep.subr.bf16.mxu0 0
        %922 = vmatpush1.bf16.msra.mxu0 0
        %923 = vmatprep.subr.bf16.mxu0 0
        %924 = vmatpush1.bf16.msra.mxu0 0
        %925 = vmatprep.subr.bf16.mxu0 0
        %926 = vmatpush1.bf16.msra.mxu0 0
        %927 = vmatprep.subr.bf16.mxu0 0
        %928 = vmatpush1.bf16.msra.mxu0 0
        %929 = vmatprep.subr.bf16.mxu0 0
        %930 = vmatpush1.bf16.msra.mxu0 0
        %931 = vmatprep.subr.bf16.mxu0 0
        %932 = vmatpush1.bf16.msra.mxu0 %v915
        %933 = vmatprep.subr.bf16.mxu0 0
        %934 = vmatpush2.bf16.msra.mxu0 0
        %935 = vmatprep.subr.bf16.mxu0 0
        %936 = vmatpush2.bf16.msra.mxu0 0
        %937 = vmatprep.subr.bf16.mxu0 0
        %938 = vmatpush2.bf16.msra.mxu0 0
        %939 = vmatprep.subr.bf16.mxu0 0
        %940 = vmatpush2.bf16.msra.mxu0 0
        %941 = vmatprep.subr.bf16.mxu0 0
        %942 = vmatpush2.bf16.msra.mxu0 0
        %943 = vmatprep.subr.bf16.mxu0 0
        %944 = vmatpush2.bf16.msra.mxu0 0
        %945 = vmatprep.subr.bf16.mxu0 0
        %946 = vmatpush2.bf16.msra.mxu0 0
        %947 = vmatprep.subr.bf16.mxu0 0
        %948 = vmatpush2.bf16.msra.mxu0 0
        %949 = vmatprep.mubr.bf16.mxu0 0
        %950 = vmatmul.mubr.bf16.gmra.mxu0 %v912
        %v951 = vpop.f32.mrf.mxu0
        %v952 = vadd.f32 0.0, %v951
        %v953 = vpop.f32.mrf.mxu0
        %v954 = vpop.f32.mrf.mxu0
        %v955 = vadd.f32 0.0, %v954
        %v956 = vpop.f32.mrf.mxu0
        %957 = vdwg.mxu0
        %959 = vrot.lane.b32.xlu0 %v955, 32
        %v960 = vpop.permute.xlu0 %959
        %v962 = vsel %vm633, %v952, %v960
        %964 = vrot.lane.b32.xlu0 %v962, 64
        %v965 = vpop.permute.xlu0 %964
        %vm967 = vcmask 1048064
        %968 = vst.msk [vmem:[#allocation2] sm:$0xff] %vm967, %v965
        %v969 = vld [vmem:[#allocation2] sm:$0xff]
        %v970 = vpack.c.bf16 %v969, %v969
        %v971 = vld [vmem:[#allocation9] sm:$0xf]
        %v972 = vld [vmem:[#allocation9 + $0x4] sm:$0xf]
        %v973 = vld [vmem:[#allocation9 + $0x8] sm:$0xf]
        %v974 = vld [vmem:[#allocation9 + $0xc] sm:$0xf]
        %v975 = vld [vmem:[#allocation9 + $0x10] sm:$0xf]
        %v976 = vld [vmem:[#allocation9 + $0x14] sm:$0xf]
        %v977 = vld [vmem:[#allocation9 + $0x18] sm:$0xf]
        %v978 = vld [vmem:[#allocation9 + $0x1c] sm:$0xf]
        %v979 = vld [vmem:[#allocation9 + $0x20] sm:$0xf]
        %v980 = vld [vmem:[#allocation9 + $0x24] sm:$0xf]
        %v981 = vld [vmem:[#allocation9 + $0x28] sm:$0xf]
        %v982 = vld [vmem:[#allocation9 + $0x2c] sm:$0xf]
        %v983 = vld [vmem:[#allocation9 + $0x30] sm:$0xf]
        %v984 = vld [vmem:[#allocation9 + $0x34] sm:$0xf]
        %v985 = vld [vmem:[#allocation9 + $0x38] sm:$0xf]
        %v986 = vld [vmem:[#allocation9 + $0x3c] sm:$0xf]
        %v987 = vld [vmem:[%s4] sm:$0x1]
        %v989 = vlaneseq
        %v990 = vshrl.u32 %v989, 7
        %v991 = vsub.s32 0, %v990
        %v992 = vrot.slane %v987, %v991
        %v1010 = vunpack.c.l.b16 %v971
        %v1011 = vunpack.c.l.b16 %v972
        %v1012 = vunpack.c.l.b16 %v973
        %v1013 = vunpack.c.l.b16 %v974
        %v1014 = vunpack.c.l.b16 %v975
        %v1015 = vunpack.c.l.b16 %v976
        %v1016 = vunpack.c.l.b16 %v977
        %v1017 = vunpack.c.l.b16 %v978
        %v1018 = vunpack.c.l.b16 %v979
        %v1019 = vunpack.c.l.b16 %v980
        %v1020 = vunpack.c.l.b16 %v981
        %v1021 = vunpack.c.l.b16 %v982
        %v1022 = vunpack.c.l.b16 %v983
        %v1023 = vunpack.c.l.b16 %v984
        %v1024 = vunpack.c.l.b16 %v985
        %v1025 = vunpack.c.l.b16 %v986
        %v1026 = vpack.c.b16 %v1011, %v1010
        %v1027 = vpack.c.b16 %v1013, %v1012
        %v1028 = vpack.c.b16 %v1015, %v1014
        %v1029 = vpack.c.b16 %v1017, %v1016
        %v1030 = vpack.c.b16 %v1019, %v1018
        %v1031 = vpack.c.b16 %v1021, %v1020
        %v1032 = vpack.c.b16 %v1023, %v1022
        %v1033 = vpack.c.b16 %v1025, %v1024
        %1042 = vmatprep.subr.bf16.mxu0 0
        %1043 = vmatpush1.bf16.msra.mxu0 %v1033
        %1044 = vmatprep.subr.bf16.mxu0 0
        %1045 = vmatpush1.bf16.msra.mxu0 %v1032
        %1046 = vmatprep.subr.bf16.mxu0 0
        %1047 = vmatpush1.bf16.msra.mxu0 %v1031
        %1048 = vmatprep.subr.bf16.mxu0 0
        %1049 = vmatpush1.bf16.msra.mxu0 %v1030
        %1050 = vmatprep.subr.bf16.mxu0 0
        %1051 = vmatpush1.bf16.msra.mxu0 %v1029
        %1052 = vmatprep.subr.bf16.mxu0 0
        %1053 = vmatpush1.bf16.msra.mxu0 %v1028
        %1054 = vmatprep.subr.bf16.mxu0 0
        %1055 = vmatpush1.bf16.msra.mxu0 %v1027
        %1056 = vmatprep.subr.bf16.mxu0 0
        %1057 = vmatpush1.bf16.msra.mxu0 %v1026
        %1058 = vmatprep.subr.bf16.mxu0 0
        %1059 = vmatpush2.bf16.msra.mxu0 0
        %1060 = vmatprep.subr.bf16.mxu0 0
        %1061 = vmatpush2.bf16.msra.mxu0 0
        %1062 = vmatprep.subr.bf16.mxu0 0
        %1063 = vmatpush2.bf16.msra.mxu0 0
        %1064 = vmatprep.subr.bf16.mxu0 0
        %1065 = vmatpush2.bf16.msra.mxu0 0
        %1066 = vmatprep.subr.bf16.mxu0 0
        %1067 = vmatpush2.bf16.msra.mxu0 0
        %1068 = vmatprep.subr.bf16.mxu0 0
        %1069 = vmatpush2.bf16.msra.mxu0 0
        %1070 = vmatprep.subr.bf16.mxu0 0
        %1071 = vmatpush2.bf16.msra.mxu0 0
        %1072 = vmatprep.subr.bf16.mxu0 0
        %1073 = vmatpush2.bf16.msra.mxu0 0
        %1074 = vmatprep.mubr.bf16.mxu0 0
        %1075 = vmatmul.mubr.bf16.gmra.mxu0 %v970
        %v1076 = vpop.f32.mrf.mxu0
        %v1077 = vadd.f32 %v992, %v1076
        %v1078 = vpop.f32.mrf.mxu0
        %v1079 = vpop.f32.mrf.mxu0
        %v1080 = vpop.f32.mrf.mxu0
        %1081 = vdwg.mxu0
        %1082 = vst [vmem:[%s347] sm:$0xff] %v1077
        %s1083 = sand.u32 %s186, 1
        %s1084 = scalar_lea.sflag [#allocation5], %s1083
        %s1085 = sand.u32 %s186, 1
        %s1086 = smul.addr %s1085, 8
        %s1087 = scalar_lea.vmem [#allocation12], %s1086
        // Predicated region
        $region69: #{tpu_custom_call.1} parent=47 // pred_check
          %p1088 = pneg %p196
        $region70: #{tpu_custom_call.1} parent=47 // pred_check_branch
          %1090 = sbr.rel (%p1088) target = $region72
        $region71: #{tpu_custom_call.1} parent=47 // pred_region
          %s1092 = ssub.s32 128, 128
          %1093 = vsyncadd %s1084, %s1092
          %s1094 = smul.addr %s26, 128
          %s1095 = scalar_lea.hbm %s7, %s1094
          %s1097 = sshll.u32 %s1087, 4
          %s1098 = int_to_ptr.vmem [resolvable:$true] %s1097
          %1100 = dma.vmem_to_hbm [thread:$0]  %s1098, 128, %s1095, %s1084
        $region72: #{tpu_custom_call.1} parent=47 // pred_fallthru
          _
      $region48: #{tpu_custom_call.1} parent=5 // pred_fallthru
        _
      %p1101 = scmp.le.s32.totalorder 2, %s21
      // Predicated region
      $region73: #{tpu_custom_call.1} parent=5 // pred_check
        %p1102 = pneg %p1101
      $region74: #{tpu_custom_call.1} parent=5 // pred_check_branch
        %1104 = sbr.rel (%p1102) target = $region76
      $region75: #{tpu_custom_call.1} parent=5 // pred_region
        %s1105 = ssub.s32 %s21, 2
        // Predicated region
        $region77: #{tpu_custom_call.1} parent=75 // pred_check
          %p1106 = pneg %p202
        $region78: #{tpu_custom_call.1} parent=75 // pred_check_branch
          %1108 = sbr.rel (%p1106) target = $region80
        $region79: #{tpu_custom_call.1} parent=75 // pred_region
          %s1109 = sand.u32 %s187, 1
          %s1110 = scalar_lea.sflag [#allocation5], %s1109
          %s1111 = sand.u32 %s187, 1
          %s1112 = smul.addr %s1111, 8
          %s1113 = scalar_lea.vmem [#allocation12], %s1112
          %1114 = dma.done %s1110, 128
        $region80: #{tpu_custom_call.1} parent=75 // pred_fallthru
          _
      $region76: #{tpu_custom_call.1} parent=5 // pred_fallthru
        _
    $region6: #{tpu_custom_call.1} parent=1 // loop_footer
      %s25 = sadd.s32 1, %s21
    $region7: #{tpu_custom_call.1} parent=1 // loop_footer_branch
      %20 = sbr.rel target = $region3
    $region8: #{tpu_custom_call.1} parent=1 // loop_exit
      _
    %1115 = vsyncpa [#allocation4], 1
    %s1116 = scalar_lea.sflag [#allocation4], 1
    %1117 = vsyncpa %s1116, 1
    %1118 = vsyncpa [#allocation7], 1
    %1119 = vsyncpa [#allocation10], 1
    %1120 = vsyncpa [#allocation5], 1
    %s1121 = scalar_lea.sflag [#allocation5], 1
    %1122 = vsyncpa %s1121, 1

</llo_original>
